<compile_context>
chip_gen: v6e
topology: v6e:2x2x1
jax: 0.10.0
libtpu: 0.0.40
codegen_flags: <defaults>
</compile_context>

<pallas_src>
import functools

import jax
import jax.numpy as jnp
import numpy as np
from jax.experimental import pallas as pl
from jax.experimental.pallas import tpu as pltpu


def _round_up(x, m):
    return (x + m - 1) // m * m


def _pick_t_blk(s, cap=8):
    """Largest divisor of s that is <= cap (avoids dead tail timesteps)."""
    for d in range(min(s, cap), 0, -1):
        if s % d == 0:
            return d
    return 1


# ----------------------------------------------------------------------------
# Fused kernel: per-block input projection + 2-layer LSTM recurrence + head
# ----------------------------------------------------------------------------
def _fused_lstm_kernel(
    x_ref,       # (t_blk*Bp, I)   input rows for this block
    wih0_ref,    # (I,  G)         layer-0 input weights (packed gates)
    b0_ref,      # (1,  G)         layer-0 combined bias
    whh0_ref,    # (Hg, G)         layer-0 recurrent weights
    wih1_ref,    # (Hg, G)         layer-1 input weights
    whh1_ref,    # (Hg, G)         layer-1 recurrent weights
    b1_ref,      # (1,  G)         layer-1 combined bias
    wlin_ref,    # (Hg, Op)        linear head weights (lane padded)
    blin_ref,    # (1,  Op)        linear head bias
    y_ref,       # (t_blk*Bp, Op)  output block (lane-dense)
    h1_ref, c1_ref, h2_ref, c2_ref,  # (Bp, Hg) state scratch (persist across grid)
    h2blk_ref,   # (t_blk*Bp, Hg)  layer-1 hidden states for this block
    *,
    hg: int,
    t_blk: int,
    bp: int,
):
    # Zero-init recurrent state at the very first block only.
    @pl.when(pl.program_id(0) == 0)
    def _():
        h1_ref[...] = jnp.zeros_like(h1_ref)
        c1_ref[...] = jnp.zeros_like(c1_ref)
        h2_ref[...] = jnp.zeros_like(h2_ref)
        c2_ref[...] = jnp.zeros_like(c2_ref)

    # Hoisted non-recurrent layer-0 input projection for ALL timesteps in the
    # block (one matmul, off the serial critical path).
    xproj = (
        jnp.dot(x_ref[...], wih0_ref[...], preferred_element_type=jnp.float32)
        + b0_ref[...]
    )

    whh0 = whh0_ref[...]
    wih1 = wih1_ref[...]
    whh1 = whh1_ref[...]
    b1 = b1_ref[...]

    def lstm_cell(g, c_prev):
        # g: (Bp, 4*Hg) packed [i | f | g | o]; PyTorch gate order.
        sig = jax.nn.sigmoid(g)
        th = jnp.tanh(g)
        i_g = sig[:, 0 * hg:1 * hg]
        f_g = sig[:, 1 * hg:2 * hg]
        g_g = th[:, 2 * hg:3 * hg]
        o_g = sig[:, 3 * hg:4 * hg]
        c_new = f_g * c_prev + i_g * g_g
        h_new = o_g * jnp.tanh(c_new)
        return h_new, c_new

    # States live in vregs for the duration of the (short, fully unrolled)
    # block loop; written back to VMEM scratch once per block.
    h1 = h1_ref[...]
    c1 = c1_ref[...]
    h2 = h2_ref[...]
    c2 = c2_ref[...]
    for t in range(t_blk):          # t_blk <= 8: fully unrolled, static slices
        r0 = t * bp
        # Layer 0: x-part precomputed; only the recurrent matmul per step.
        g0 = xproj[r0:r0 + bp, :] + jnp.dot(
            h1, whh0, preferred_element_type=jnp.float32)
        h1, c1 = lstm_cell(g0, c1)
        # Layer 1: two small K=Hg matmuls accumulated in f32 (no concat).
        g1 = (
            jnp.dot(h1, wih1, preferred_element_type=jnp.float32)
            + jnp.dot(h2, whh1, preferred_element_type=jnp.float32)
            + b1
        )
        h2, c2 = lstm_cell(g1, c2)
        h2blk_ref[r0:r0 + bp, :] = h2
    h1_ref[...] = h1
    c1_ref[...] = c1
    h2_ref[...] = h2
    c2_ref[...] = c2

    # Linear head once per block, lane-dense (Op=128-padded) output slab.
    y_ref[...] = (
        jnp.dot(h2blk_ref[...], wlin_ref[...], preferred_element_type=jnp.float32)
        + blin_ref[...]
    ).astype(y_ref.dtype)


# ----------------------------------------------------------------------------
# Wrapper: padding, parameter packing, single fused pallas_call
# ----------------------------------------------------------------------------
def net_shampoo_forward(x, params, *, t_blk=None):
    """x: (S, B, I) float32 (seq, batch, feature). Returns (S, B, O) float32."""
    S, B, I = x.shape
    H = params["whh0T"].shape[0]
    O = params["wlinT"].shape[1]

    if t_blk is None:
        t_blk = _pick_t_blk(S)

    Bp = _round_up(B, 8)                       # sublane tile
    # Packed gate layout: for H <= 32 all four gates share one 128-lane group.
    Hg = 32 if 4 * H <= 128 else _round_up(H, 128)
    G = 4 * Hg
    Op = _round_up(O, 128)                     # lane-dense head output
    Sp = _round_up(S, t_blk)                   # == S when t_blk divides S
    n_blocks = Sp // t_blk

    # ---- pack / pad parameters into the kernel layout -----------------------
    def gate_pad(w, rows_to):
        # (R, 4H) -> (rows_to, 4*Hg): each gate's H columns land in its own
        # Hg-wide slot; all padding is zero so padded rows/lanes are no-ops.
        r = w.shape[0]
        w4 = w.reshape(r, 4, H)
        w4 = jnp.pad(w4, ((0, rows_to - r), (0, 0), (0, Hg - H)))
        return w4.reshape(rows_to, G)

    wih0_p = gate_pad(params["wih0T"], I)                           # (I, G)
    b0_p = gate_pad(params["b0"], 1)                                # (1, G)
    whh0_p = gate_pad(params["whh0T"], Hg)                          # (Hg, G)
    wih1_p = gate_pad(params["wih1T"], Hg)                          # (Hg, G)
    whh1_p = gate_pad(params["whh1T"], Hg)                          # (Hg, G)
    b1_p = gate_pad(params["b1"], 1)                                # (1, G)
    wlin_p = jnp.pad(params["wlinT"], ((0, Hg - H), (0, Op - O)))   # (Hg, Op)
    blin_p = jnp.pad(params["blin"], ((0, 0), (0, Op - O)))         # (1, Op)

    # ---- pad activations and flatten (seq, batch) -> rows --------------------
    xp = jnp.pad(x, ((0, Sp - S), (0, Bp - B), (0, 0)))             # (Sp, Bp, I)
    x2d = xp.reshape(Sp * Bp, I)

    kernel = functools.partial(_fused_lstm_kernel, hg=Hg, t_blk=t_blk, bp=Bp)
    full = lambda shape: pl.BlockSpec(shape, lambda s: (0,) * len(shape))

    y2d = pl.pallas_call(
        kernel,
        out_shape=jax.ShapeDtypeStruct((Sp * Bp, Op), jnp.float32),
        grid_spec=pltpu.PrefetchScalarGridSpec(
            num_scalar_prefetch=0,
            grid=(n_blocks,),
            in_specs=[
                pl.BlockSpec((t_blk * Bp, I), lambda s: (s, 0)),   # x rows
                full((I, G)),        # wih0
                full((1, G)),        # b0
                full((Hg, G)),       # whh0
                full((Hg, G)),       # wih1
                full((Hg, G)),       # whh1
                full((1, G)),        # b1
                full((Hg, Op)),      # wlin
                full((1, Op)),       # blin
            ],
            out_specs=pl.BlockSpec((t_blk * Bp, Op), lambda s: (s, 0)),
            scratch_shapes=[pltpu.VMEM((Bp, Hg), jnp.float32)] * 4     # h1,c1,h2,c2
            + [pltpu.VMEM((t_blk * Bp, Hg), jnp.float32)],             # h2 block
        ),
        compiler_params=pltpu.CompilerParams(
            dimension_semantics=("arbitrary",),     # recurrence: strict order
            vmem_limit_bytes=32 * 1024 * 1024,
        ),
    )(x2d, wih0_p, b0_p, whh0_p, wih1_p, whh1_p, b1_p, wlin_p, blin_p)

    y = y2d.reshape(Sp, Bp, Op)
    return y[:S, :B, :O]


# ----------------------------------------------------------------------------
# Parameter init (PyTorch-style U(-1/sqrt(H), 1/sqrt(H))), logical layout
# ----------------------------------------------------------------------------
def init_params(key, input_size, hidden_size, output_size):
    H, I, O = hidden_size, input_size, output_size
    k = 1.0 / np.sqrt(H)
    keys = jax.random.split(key, 10)
    u = lambda kk, shape, bound: jax.random.uniform(
        kk, shape, jnp.float32, minval=-bound, maxval=bound)
    wih0T = u(keys[0], (I, 4 * H), k)
    whh0T = u(keys[1], (H, 4 * H), k)
    b0 = u(keys[2], (1, 4 * H), k) + u(keys[3], (1, 4 * H), k)   # b_ih + b_hh
    wih1T = u(keys[4], (H, 4 * H), k)
    whh1T = u(keys[5], (H, 4 * H), k)
    b1 = u(keys[6], (1, 4 * H), k) + u(keys[7], (1, 4 * H), k)
    klin = 1.0 / np.sqrt(H)
    wlinT = u(keys[8], (H, O), klin)
    blin = u(keys[9], (1, O), klin)
    return dict(wih0T=wih0T, whh0T=whh0T, b0=b0,
                wih1T=wih1T, whh1T=whh1T, b1=b1,
                wlinT=wlinT, blin=blin)


# ----------------------------------------------------------------------------
# Pure-JAX reference (PyTorch LSTM semantics) for validation
# ----------------------------------------------------------------------------
def _reference_forward(x, params):
    S, B, I = x.shape
    H = params["whh0T"].shape[0]

    def cell(carry, inp, wihT, whhT, b):
        h, c = carry
        gates = inp @ wihT + h @ whhT + b
        i_g, f_g, g_g, o_g = jnp.split(gates, 4, axis=-1)
        i_g, f_g, o_g = jax.nn.sigmoid(i_g), jax.nn.sigmoid(f_g), jax.nn.sigmoid(o_g)
        g_g = jnp.tanh(g_g)
        c = f_g * c + i_g * g_g
        h = o_g * jnp.tanh(c)
        return (h, c), h

    def scan_layer(x_seq, wihT, whhT, b):
        init = (jnp.zeros((B, H), jnp.float32), jnp.zeros((B, H), jnp.float32))
        _, hs = jax.lax.scan(
            lambda carry, xt: cell(carry, xt, wihT, whhT, b), init, x_seq)
        return hs

    h1 = scan_layer(x, params["wih0T"], params["whh0T"], params["b0"])
    h2 = scan_layer(h1, params["wih1T"], params["whh1T"], params["b1"])
    return h2 @ params["wlinT"] + params["blin"]


if __name__ == "__main__":
    # S=12 with the auto-picked t_blk=6 gives grid=2: no dead tail timesteps
    # and the cross-grid-step state carry is exercised.
    seq_len, batch, input_size, hidden_size, output_size = 12, 2, 4, 32, 1

    key = jax.random.PRNGKey(0)
    k_x, k_p = jax.random.split(key)
    x = jax.random.normal(k_x, (seq_len, batch, input_size), jnp.float32)
    params = init_params(k_p, input_size, hidden_size, output_size)

    fwd = jax.jit(net_shampoo_forward)
    y = jax.block_until_ready(fwd(x, params))

    y_ref = _reference_forward(x, params)
    np.testing.assert_allclose(np.asarray(y), np.asarray(y_ref),
                               rtol=1e-5, atol=1e-5)

    assert y.shape == (seq_len, batch, output_size)
    print("KERNEL_OK")
</pallas_src>

<mosaic_0001>
module attributes {stable_mosaic.version = 11 : i64} {
  func.func @_fused_lstm_kernel(%arg0: i32, %arg1: memref<48x4xf32, #tpu.memory_space<vmem>>, %arg2: memref<4x128xf32, #tpu.memory_space<vmem>>, %arg3: memref<1x128xf32, #tpu.memory_space<vmem>>, %arg4: memref<32x128xf32, #tpu.memory_space<vmem>>, %arg5: memref<32x128xf32, #tpu.memory_space<vmem>>, %arg6: memref<32x128xf32, #tpu.memory_space<vmem>>, %arg7: memref<1x128xf32, #tpu.memory_space<vmem>>, %arg8: memref<32x128xf32, #tpu.memory_space<vmem>>, %arg9: memref<1x128xf32, #tpu.memory_space<vmem>>, %arg10: memref<48x128xf32, #tpu.memory_space<vmem>>, %arg11: memref<8x32xf32, #tpu.memory_space<vmem>>, %arg12: memref<8x32xf32, #tpu.memory_space<vmem>>, %arg13: memref<8x32xf32, #tpu.memory_space<vmem>>, %arg14: memref<8x32xf32, #tpu.memory_space<vmem>>, %arg15: memref<48x32xf32, #tpu.memory_space<vmem>>) attributes {dimension_semantics = [#tpu.dimension_semantics<arbitrary>], iteration_bounds = array<i64: 2>, scalar_prefetch = 0 : i64, scratch_operands = 5 : i64, tpu.core_type = #tpu.core_type<tc>, window_params = [{transform_indices = @transform_0, window_bounds = array<i64: 48, 4>}, {pipeline_mode = #tpu.pipeline_mode<synchronous>, transform_indices = @transform_1, window_bounds = array<i64: 4, 128>}, {pipeline_mode = #tpu.pipeline_mode<synchronous>, transform_indices = @transform_2, window_bounds = array<i64: 1, 128>}, {pipeline_mode = #tpu.pipeline_mode<synchronous>, transform_indices = @transform_3, window_bounds = array<i64: 32, 128>}, {pipeline_mode = #tpu.pipeline_mode<synchronous>, transform_indices = @transform_4, window_bounds = array<i64: 32, 128>}, {pipeline_mode = #tpu.pipeline_mode<synchronous>, transform_indices = @transform_5, window_bounds = array<i64: 32, 128>}, {pipeline_mode = #tpu.pipeline_mode<synchronous>, transform_indices = @transform_6, window_bounds = array<i64: 1, 128>}, {pipeline_mode = #tpu.pipeline_mode<synchronous>, transform_indices = @transform_7, window_bounds = array<i64: 32, 128>}, {pipeline_mode = #tpu.pipeline_mode<synchronous>, transform_indices = @transform_8, window_bounds = array<i64: 1, 128>}, {transform_indices = @transform_9, window_bounds = array<i64: 48, 128>}]} {
    %c0_i32 = arith.constant 0 : i32
    %0 = arith.cmpi eq, %arg0, %c0_i32 : i32
    %1 = arith.extui %0 : i1 to i32
    %c0_i32_0 = arith.constant 0 : i32
    %2 = arith.cmpi ne, %1, %c0_i32_0 : i32
    scf.if %2 {
      %cst_76 = arith.constant 0.000000e+00 : f32
      %262 = vector.broadcast %cst_76 : f32 to vector<8x32xf32>
      %c0_77 = arith.constant 0 : index
      %c0_78 = arith.constant 0 : index
      %263 = vector.load %arg11[%c0_77, %c0_78] : memref<8x32xf32, #tpu.memory_space<vmem>>, vector<8x32xf32>
      tpu.vector_store %arg11[%c0_77, %c0_78], %262 {strides = array<i32>} : memref<8x32xf32, #tpu.memory_space<vmem>>, vector<8x32xf32>,
      %cst_79 = arith.constant 0.000000e+00 : f32
      %264 = vector.broadcast %cst_79 : f32 to vector<8x32xf32>
      %c0_80 = arith.constant 0 : index
      %c0_81 = arith.constant 0 : index
      %265 = vector.load %arg12[%c0_80, %c0_81] : memref<8x32xf32, #tpu.memory_space<vmem>>, vector<8x32xf32>
      tpu.vector_store %arg12[%c0_80, %c0_81], %264 {strides = array<i32>} : memref<8x32xf32, #tpu.memory_space<vmem>>, vector<8x32xf32>,
      %cst_82 = arith.constant 0.000000e+00 : f32
      %266 = vector.broadcast %cst_82 : f32 to vector<8x32xf32>
      %c0_83 = arith.constant 0 : index
      %c0_84 = arith.constant 0 : index
      %267 = vector.load %arg13[%c0_83, %c0_84] : memref<8x32xf32, #tpu.memory_space<vmem>>, vector<8x32xf32>
      tpu.vector_store %arg13[%c0_83, %c0_84], %266 {strides = array<i32>} : memref<8x32xf32, #tpu.memory_space<vmem>>, vector<8x32xf32>,
      %cst_85 = arith.constant 0.000000e+00 : f32
      %268 = vector.broadcast %cst_85 : f32 to vector<8x32xf32>
      %c0_86 = arith.constant 0 : index
      %c0_87 = arith.constant 0 : index
      %269 = vector.load %arg14[%c0_86, %c0_87] : memref<8x32xf32, #tpu.memory_space<vmem>>, vector<8x32xf32>
      tpu.vector_store %arg14[%c0_86, %c0_87], %268 {strides = array<i32>} : memref<8x32xf32, #tpu.memory_space<vmem>>, vector<8x32xf32>,
    } else {
    }
    %c0 = arith.constant 0 : index
    %c0_1 = arith.constant 0 : index
    %3 = vector.load %arg1[%c0, %c0_1] : memref<48x4xf32, #tpu.memory_space<vmem>>, vector<48x4xf32>
    %c0_2 = arith.constant 0 : index
    %c0_3 = arith.constant 0 : index
    %4 = vector.load %arg2[%c0_2, %c0_3] : memref<4x128xf32, #tpu.memory_space<vmem>>, vector<4x128xf32>
    %cst = arith.constant dense<0.000000e+00> : vector<48x128xf32>
    %5 = tpu.matmul %3, %4, %cst {dimension_numbers = #tpu.dot_dimension_numbers<[1], [0], [0], [1], [0, 0, 1, 1], [], []>} : vector<48x4xf32>, vector<4x128xf32>, vector<48x128xf32> -> vector<48x128xf32>
    %c0_4 = arith.constant 0 : index
    %c0_5 = arith.constant 0 : index
    %6 = vector.load %arg3[%c0_4, %c0_5] : memref<1x128xf32, #tpu.memory_space<vmem>>, vector<1x128xf32>
    %7 = vector.broadcast %6 : vector<1x128xf32> to vector<48x128xf32>
    %8 = arith.addf %5, %7 : vector<48x128xf32>
    %c0_6 = arith.constant 0 : index
    %c0_7 = arith.constant 0 : index
    %9 = vector.load %arg4[%c0_6, %c0_7] : memref<32x128xf32, #tpu.memory_space<vmem>>, vector<32x128xf32>
    %c0_8 = arith.constant 0 : index
    %c0_9 = arith.constant 0 : index
    %10 = vector.load %arg5[%c0_8, %c0_9] : memref<32x128xf32, #tpu.memory_space<vmem>>, vector<32x128xf32>
    %c0_10 = arith.constant 0 : index
    %c0_11 = arith.constant 0 : index
    %11 = vector.load %arg6[%c0_10, %c0_11] : memref<32x128xf32, #tpu.memory_space<vmem>>, vector<32x128xf32>
    %c0_12 = arith.constant 0 : index
    %c0_13 = arith.constant 0 : index
    %12 = vector.load %arg7[%c0_12, %c0_13] : memref<1x128xf32, #tpu.memory_space<vmem>>, vector<1x128xf32>
    %c0_14 = arith.constant 0 : index
    %c0_15 = arith.constant 0 : index
    %13 = vector.load %arg11[%c0_14, %c0_15] : memref<8x32xf32, #tpu.memory_space<vmem>>, vector<8x32xf32>
    %c0_16 = arith.constant 0 : index
    %c0_17 = arith.constant 0 : index
    %14 = vector.load %arg12[%c0_16, %c0_17] : memref<8x32xf32, #tpu.memory_space<vmem>>, vector<8x32xf32>
    %c0_18 = arith.constant 0 : index
    %c0_19 = arith.constant 0 : index
    %15 = vector.load %arg13[%c0_18, %c0_19] : memref<8x32xf32, #tpu.memory_space<vmem>>, vector<8x32xf32>
    %c0_20 = arith.constant 0 : index
    %c0_21 = arith.constant 0 : index
    %16 = vector.load %arg14[%c0_20, %c0_21] : memref<8x32xf32, #tpu.memory_space<vmem>>, vector<8x32xf32>
    %17 = vector.extract_strided_slice %8 {offsets = [0, 0], sizes = [8, 128], strides = [1, 1]} : vector<48x128xf32> to vector<8x128xf32>
    %cst_22 = arith.constant dense<0.000000e+00> : vector<8x128xf32>
    %18 = tpu.matmul %13, %9, %cst_22 {dimension_numbers = #tpu.dot_dimension_numbers<[1], [0], [0], [1], [0, 0, 1, 1], [], []>} : vector<8x32xf32>, vector<32x128xf32>, vector<8x128xf32> -> vector<8x128xf32>
    %19 = arith.addf %17, %18 : vector<8x128xf32>
    %20 = arith.negf %19 : vector<8x128xf32>
    %21 = math.exp %20 : vector<8x128xf32>
    %cst_23 = arith.constant 1.000000e+00 : f32
    %22 = vector.broadcast %cst_23 : f32 to vector<8x128xf32>
    %23 = arith.addf %22, %21 : vector<8x128xf32>
    %24 = arith.divf %22, %23 : vector<8x128xf32>
    %25 = math.tanh %19 : vector<8x128xf32>
    %26 = vector.extract_strided_slice %24 {offsets = [0, 0], sizes = [8, 32], strides = [1, 1]} : vector<8x128xf32> to vector<8x32xf32>
    %27 = vector.extract_strided_slice %24 {offsets = [0, 32], sizes = [8, 32], strides = [1, 1]} : vector<8x128xf32> to vector<8x32xf32>
    %28 = vector.extract_strided_slice %25 {offsets = [0, 64], sizes = [8, 32], strides = [1, 1]} : vector<8x128xf32> to vector<8x32xf32>
    %29 = vector.extract_strided_slice %24 {offsets = [0, 96], sizes = [8, 32], strides = [1, 1]} : vector<8x128xf32> to vector<8x32xf32>
    %30 = arith.mulf %27, %14 : vector<8x32xf32>
    %31 = arith.mulf %26, %28 : vector<8x32xf32>
    %32 = arith.addf %30, %31 : vector<8x32xf32>
    %33 = math.tanh %32 : vector<8x32xf32>
    %34 = arith.mulf %29, %33 : vector<8x32xf32>
    %cst_24 = arith.constant dense<0.000000e+00> : vector<8x128xf32>
    %35 = tpu.matmul %34, %10, %cst_24 {dimension_numbers = #tpu.dot_dimension_numbers<[1], [0], [0], [1], [0, 0, 1, 1], [], []>} : vector<8x32xf32>, vector<32x128xf32>, vector<8x128xf32> -> vector<8x128xf32>
    %cst_25 = arith.constant dense<0.000000e+00> : vector<8x128xf32>
    %36 = tpu.matmul %15, %11, %cst_25 {dimension_numbers = #tpu.dot_dimension_numbers<[1], [0], [0], [1], [0, 0, 1, 1], [], []>} : vector<8x32xf32>, vector<32x128xf32>, vector<8x128xf32> -> vector<8x128xf32>
    %37 = arith.addf %35, %36 : vector<8x128xf32>
    %38 = vector.broadcast %12 : vector<1x128xf32> to vector<8x128xf32>
    %39 = arith.addf %37, %38 : vector<8x128xf32>
    %40 = arith.negf %39 : vector<8x128xf32>
    %41 = math.exp %40 : vector<8x128xf32>
    %cst_26 = arith.constant 1.000000e+00 : f32
    %42 = vector.broadcast %cst_26 : f32 to vector<8x128xf32>
    %43 = arith.addf %42, %41 : vector<8x128xf32>
    %44 = arith.divf %42, %43 : vector<8x128xf32>
    %45 = math.tanh %39 : vector<8x128xf32>
    %46 = vector.extract_strided_slice %44 {offsets = [0, 0], sizes = [8, 32], strides = [1, 1]} : vector<8x128xf32> to vector<8x32xf32>
    %47 = vector.extract_strided_slice %44 {offsets = [0, 32], sizes = [8, 32], strides = [1, 1]} : vector<8x128xf32> to vector<8x32xf32>
    %48 = vector.extract_strided_slice %45 {offsets = [0, 64], sizes = [8, 32], strides = [1, 1]} : vector<8x128xf32> to vector<8x32xf32>
    %49 = vector.extract_strided_slice %44 {offsets = [0, 96], sizes = [8, 32], strides = [1, 1]} : vector<8x128xf32> to vector<8x32xf32>
    %50 = arith.mulf %47, %16 : vector<8x32xf32>
    %51 = arith.mulf %46, %48 : vector<8x32xf32>
    %52 = arith.addf %50, %51 : vector<8x32xf32>
    %53 = math.tanh %52 : vector<8x32xf32>
    %54 = arith.mulf %49, %53 : vector<8x32xf32>
    %c0_27 = arith.constant 0 : index
    %c0_28 = arith.constant 0 : index
    %55 = vector.load %arg15[%c0_27, %c0_28] : memref<48x32xf32, #tpu.memory_space<vmem>>, vector<8x32xf32>
    tpu.vector_store %arg15[%c0_27, %c0_28], %54 {strides = array<i32>} : memref<48x32xf32, #tpu.memory_space<vmem>>, vector<8x32xf32>,
    %56 = vector.extract_strided_slice %8 {offsets = [8, 0], sizes = [8, 128], strides = [1, 1]} : vector<48x128xf32> to vector<8x128xf32>
    %cst_29 = arith.constant dense<0.000000e+00> : vector<8x128xf32>
    %57 = tpu.matmul %34, %9, %cst_29 {dimension_numbers = #tpu.dot_dimension_numbers<[1], [0], [0], [1], [0, 0, 1, 1], [], []>} : vector<8x32xf32>, vector<32x128xf32>, vector<8x128xf32> -> vector<8x128xf32>
    %58 = arith.addf %56, %57 : vector<8x128xf32>
    %59 = arith.negf %58 : vector<8x128xf32>
    %60 = math.exp %59 : vector<8x128xf32>
    %cst_30 = arith.constant 1.000000e+00 : f32
    %61 = vector.broadcast %cst_30 : f32 to vector<8x128xf32>
    %62 = arith.addf %61, %60 : vector<8x128xf32>
    %63 = arith.divf %61, %62 : vector<8x128xf32>
    %64 = math.tanh %58 : vector<8x128xf32>
    %65 = vector.extract_strided_slice %63 {offsets = [0, 0], sizes = [8, 32], strides = [1, 1]} : vector<8x128xf32> to vector<8x32xf32>
    %66 = vector.extract_strided_slice %63 {offsets = [0, 32], sizes = [8, 32], strides = [1, 1]} : vector<8x128xf32> to vector<8x32xf32>
    %67 = vector.extract_strided_slice %64 {offsets = [0, 64], sizes = [8, 32], strides = [1, 1]} : vector<8x128xf32> to vector<8x32xf32>
    %68 = vector.extract_strided_slice %63 {offsets = [0, 96], sizes = [8, 32], strides = [1, 1]} : vector<8x128xf32> to vector<8x32xf32>
    %69 = arith.mulf %66, %32 : vector<8x32xf32>
    %70 = arith.mulf %65, %67 : vector<8x32xf32>
    %71 = arith.addf %69, %70 : vector<8x32xf32>
    %72 = math.tanh %71 : vector<8x32xf32>
    %73 = arith.mulf %68, %72 : vector<8x32xf32>
    %cst_31 = arith.constant dense<0.000000e+00> : vector<8x128xf32>
    %74 = tpu.matmul %73, %10, %cst_31 {dimension_numbers = #tpu.dot_dimension_numbers<[1], [0], [0], [1], [0, 0, 1, 1], [], []>} : vector<8x32xf32>, vector<32x128xf32>, vector<8x128xf32> -> vector<8x128xf32>
    %cst_32 = arith.constant dense<0.000000e+00> : vector<8x128xf32>
    %75 = tpu.matmul %54, %11, %cst_32 {dimension_numbers = #tpu.dot_dimension_numbers<[1], [0], [0], [1], [0, 0, 1, 1], [], []>} : vector<8x32xf32>, vector<32x128xf32>, vector<8x128xf32> -> vector<8x128xf32>
    %76 = arith.addf %74, %75 : vector<8x128xf32>
    %77 = vector.broadcast %12 : vector<1x128xf32> to vector<8x128xf32>
    %78 = arith.addf %76, %77 : vector<8x128xf32>
    %79 = arith.negf %78 : vector<8x128xf32>
    %80 = math.exp %79 : vector<8x128xf32>
    %cst_33 = arith.constant 1.000000e+00 : f32
    %81 = vector.broadcast %cst_33 : f32 to vector<8x128xf32>
    %82 = arith.addf %81, %80 : vector<8x128xf32>
    %83 = arith.divf %81, %82 : vector<8x128xf32>
    %84 = math.tanh %78 : vector<8x128xf32>
    %85 = vector.extract_strided_slice %83 {offsets = [0, 0], sizes = [8, 32], strides = [1, 1]} : vector<8x128xf32> to vector<8x32xf32>
    %86 = vector.extract_strided_slice %83 {offsets = [0, 32], sizes = [8, 32], strides = [1, 1]} : vector<8x128xf32> to vector<8x32xf32>
    %87 = vector.extract_strided_slice %84 {offsets = [0, 64], sizes = [8, 32], strides = [1, 1]} : vector<8x128xf32> to vector<8x32xf32>
    %88 = vector.extract_strided_slice %83 {offsets = [0, 96], sizes = [8, 32], strides = [1, 1]} : vector<8x128xf32> to vector<8x32xf32>
    %89 = arith.mulf %86, %52 : vector<8x32xf32>
    %90 = arith.mulf %85, %87 : vector<8x32xf32>
    %91 = arith.addf %89, %90 : vector<8x32xf32>
    %92 = math.tanh %91 : vector<8x32xf32>
    %93 = arith.mulf %88, %92 : vector<8x32xf32>
    %c8 = arith.constant 8 : index
    %c0_34 = arith.constant 0 : index
    %94 = vector.load %arg15[%c8, %c0_34] : memref<48x32xf32, #tpu.memory_space<vmem>>, vector<8x32xf32>
    tpu.vector_store %arg15[%c8, %c0_34], %93 {strides = array<i32>} : memref<48x32xf32, #tpu.memory_space<vmem>>, vector<8x32xf32>,
    %95 = vector.extract_strided_slice %8 {offsets = [16, 0], sizes = [8, 128], strides = [1, 1]} : vector<48x128xf32> to vector<8x128xf32>
    %cst_35 = arith.constant dense<0.000000e+00> : vector<8x128xf32>
    %96 = tpu.matmul %73, %9, %cst_35 {dimension_numbers = #tpu.dot_dimension_numbers<[1], [0], [0], [1], [0, 0, 1, 1], [], []>} : vector<8x32xf32>, vector<32x128xf32>, vector<8x128xf32> -> vector<8x128xf32>
    %97 = arith.addf %95, %96 : vector<8x128xf32>
    %98 = arith.negf %97 : vector<8x128xf32>
    %99 = math.exp %98 : vector<8x128xf32>
    %cst_36 = arith.constant 1.000000e+00 : f32
    %100 = vector.broadcast %cst_36 : f32 to vector<8x128xf32>
    %101 = arith.addf %100, %99 : vector<8x128xf32>
    %102 = arith.divf %100, %101 : vector<8x128xf32>
    %103 = math.tanh %97 : vector<8x128xf32>
    %104 = vector.extract_strided_slice %102 {offsets = [0, 0], sizes = [8, 32], strides = [1, 1]} : vector<8x128xf32> to vector<8x32xf32>
    %105 = vector.extract_strided_slice %102 {offsets = [0, 32], sizes = [8, 32], strides = [1, 1]} : vector<8x128xf32> to vector<8x32xf32>
    %106 = vector.extract_strided_slice %103 {offsets = [0, 64], sizes = [8, 32], strides = [1, 1]} : vector<8x128xf32> to vector<8x32xf32>
    %107 = vector.extract_strided_slice %102 {offsets = [0, 96], sizes = [8, 32], strides = [1, 1]} : vector<8x128xf32> to vector<8x32xf32>
    %108 = arith.mulf %105, %71 : vector<8x32xf32>
    %109 = arith.mulf %104, %106 : vector<8x32xf32>
    %110 = arith.addf %108, %109 : vector<8x32xf32>
    %111 = math.tanh %110 : vector<8x32xf32>
    %112 = arith.mulf %107, %111 : vector<8x32xf32>
    %cst_37 = arith.constant dense<0.000000e+00> : vector<8x128xf32>
    %113 = tpu.matmul %112, %10, %cst_37 {dimension_numbers = #tpu.dot_dimension_numbers<[1], [0], [0], [1], [0, 0, 1, 1], [], []>} : vector<8x32xf32>, vector<32x128xf32>, vector<8x128xf32> -> vector<8x128xf32>
    %cst_38 = arith.constant dense<0.000000e+00> : vector<8x128xf32>
    %114 = tpu.matmul %93, %11, %cst_38 {dimension_numbers = #tpu.dot_dimension_numbers<[1], [0], [0], [1], [0, 0, 1, 1], [], []>} : vector<8x32xf32>, vector<32x128xf32>, vector<8x128xf32> -> vector<8x128xf32>
    %115 = arith.addf %113, %114 : vector<8x128xf32>
    %116 = vector.broadcast %12 : vector<1x128xf32> to vector<8x128xf32>
    %117 = arith.addf %115, %116 : vector<8x128xf32>
    %118 = arith.negf %117 : vector<8x128xf32>
    %119 = math.exp %118 : vector<8x128xf32>
    %cst_39 = arith.constant 1.000000e+00 : f32
    %120 = vector.broadcast %cst_39 : f32 to vector<8x128xf32>
    %121 = arith.addf %120, %119 : vector<8x128xf32>
    %122 = arith.divf %120, %121 : vector<8x128xf32>
    %123 = math.tanh %117 : vector<8x128xf32>
    %124 = vector.extract_strided_slice %122 {offsets = [0, 0], sizes = [8, 32], strides = [1, 1]} : vector<8x128xf32> to vector<8x32xf32>
    %125 = vector.extract_strided_slice %122 {offsets = [0, 32], sizes = [8, 32], strides = [1, 1]} : vector<8x128xf32> to vector<8x32xf32>
    %126 = vector.extract_strided_slice %123 {offsets = [0, 64], sizes = [8, 32], strides = [1, 1]} : vector<8x128xf32> to vector<8x32xf32>
    %127 = vector.extract_strided_slice %122 {offsets = [0, 96], sizes = [8, 32], strides = [1, 1]} : vector<8x128xf32> to vector<8x32xf32>
    %128 = arith.mulf %125, %91 : vector<8x32xf32>
    %129 = arith.mulf %124, %126 : vector<8x32xf32>
    %130 = arith.addf %128, %129 : vector<8x32xf32>
    %131 = math.tanh %130 : vector<8x32xf32>
    %132 = arith.mulf %127, %131 : vector<8x32xf32>
    %c16 = arith.constant 16 : index
    %c0_40 = arith.constant 0 : index
    %133 = vector.load %arg15[%c16, %c0_40] : memref<48x32xf32, #tpu.memory_space<vmem>>, vector<8x32xf32>
    tpu.vector_store %arg15[%c16, %c0_40], %132 {strides = array<i32>} : memref<48x32xf32, #tpu.memory_space<vmem>>, vector<8x32xf32>,
    %134 = vector.extract_strided_slice %8 {offsets = [24, 0], sizes = [8, 128], strides = [1, 1]} : vector<48x128xf32> to vector<8x128xf32>
    %cst_41 = arith.constant dense<0.000000e+00> : vector<8x128xf32>
    %135 = tpu.matmul %112, %9, %cst_41 {dimension_numbers = #tpu.dot_dimension_numbers<[1], [0], [0], [1], [0, 0, 1, 1], [], []>} : vector<8x32xf32>, vector<32x128xf32>, vector<8x128xf32> -> vector<8x128xf32>
    %136 = arith.addf %134, %135 : vector<8x128xf32>
    %137 = arith.negf %136 : vector<8x128xf32>
    %138 = math.exp %137 : vector<8x128xf32>
    %cst_42 = arith.constant 1.000000e+00 : f32
    %139 = vector.broadcast %cst_42 : f32 to vector<8x128xf32>
    %140 = arith.addf %139, %138 : vector<8x128xf32>
    %141 = arith.divf %139, %140 : vector<8x128xf32>
    %142 = math.tanh %136 : vector<8x128xf32>
    %143 = vector.extract_strided_slice %141 {offsets = [0, 0], sizes = [8, 32], strides = [1, 1]} : vector<8x128xf32> to vector<8x32xf32>
    %144 = vector.extract_strided_slice %141 {offsets = [0, 32], sizes = [8, 32], strides = [1, 1]} : vector<8x128xf32> to vector<8x32xf32>
    %145 = vector.extract_strided_slice %142 {offsets = [0, 64], sizes = [8, 32], strides = [1, 1]} : vector<8x128xf32> to vector<8x32xf32>
    %146 = vector.extract_strided_slice %141 {offsets = [0, 96], sizes = [8, 32], strides = [1, 1]} : vector<8x128xf32> to vector<8x32xf32>
    %147 = arith.mulf %144, %110 : vector<8x32xf32>
    %148 = arith.mulf %143, %145 : vector<8x32xf32>
    %149 = arith.addf %147, %148 : vector<8x32xf32>
    %150 = math.tanh %149 : vector<8x32xf32>
    %151 = arith.mulf %146, %150 : vector<8x32xf32>
    %cst_43 = arith.constant dense<0.000000e+00> : vector<8x128xf32>
    %152 = tpu.matmul %151, %10, %cst_43 {dimension_numbers = #tpu.dot_dimension_numbers<[1], [0], [0], [1], [0, 0, 1, 1], [], []>} : vector<8x32xf32>, vector<32x128xf32>, vector<8x128xf32> -> vector<8x128xf32>
    %cst_44 = arith.constant dense<0.000000e+00> : vector<8x128xf32>
    %153 = tpu.matmul %132, %11, %cst_44 {dimension_numbers = #tpu.dot_dimension_numbers<[1], [0], [0], [1], [0, 0, 1, 1], [], []>} : vector<8x32xf32>, vector<32x128xf32>, vector<8x128xf32> -> vector<8x128xf32>
    %154 = arith.addf %152, %153 : vector<8x128xf32>
    %155 = vector.broadcast %12 : vector<1x128xf32> to vector<8x128xf32>
    %156 = arith.addf %154, %155 : vector<8x128xf32>
    %157 = arith.negf %156 : vector<8x128xf32>
    %158 = math.exp %157 : vector<8x128xf32>
    %cst_45 = arith.constant 1.000000e+00 : f32
    %159 = vector.broadcast %cst_45 : f32 to vector<8x128xf32>
    %160 = arith.addf %159, %158 : vector<8x128xf32>
    %161 = arith.divf %159, %160 : vector<8x128xf32>
    %162 = math.tanh %156 : vector<8x128xf32>
    %163 = vector.extract_strided_slice %161 {offsets = [0, 0], sizes = [8, 32], strides = [1, 1]} : vector<8x128xf32> to vector<8x32xf32>
    %164 = vector.extract_strided_slice %161 {offsets = [0, 32], sizes = [8, 32], strides = [1, 1]} : vector<8x128xf32> to vector<8x32xf32>
    %165 = vector.extract_strided_slice %162 {offsets = [0, 64], sizes = [8, 32], strides = [1, 1]} : vector<8x128xf32> to vector<8x32xf32>
    %166 = vector.extract_strided_slice %161 {offsets = [0, 96], sizes = [8, 32], strides = [1, 1]} : vector<8x128xf32> to vector<8x32xf32>
    %167 = arith.mulf %164, %130 : vector<8x32xf32>
    %168 = arith.mulf %163, %165 : vector<8x32xf32>
    %169 = arith.addf %167, %168 : vector<8x32xf32>
    %170 = math.tanh %169 : vector<8x32xf32>
    %171 = arith.mulf %166, %170 : vector<8x32xf32>
    %c24 = arith.constant 24 : index
    %c0_46 = arith.constant 0 : index
    %172 = vector.load %arg15[%c24, %c0_46] : memref<48x32xf32, #tpu.memory_space<vmem>>, vector<8x32xf32>
    tpu.vector_store %arg15[%c24, %c0_46], %171 {strides = array<i32>} : memref<48x32xf32, #tpu.memory_space<vmem>>, vector<8x32xf32>,
    %173 = vector.extract_strided_slice %8 {offsets = [32, 0], sizes = [8, 128], strides = [1, 1]} : vector<48x128xf32> to vector<8x128xf32>
    %cst_47 = arith.constant dense<0.000000e+00> : vector<8x128xf32>
    %174 = tpu.matmul %151, %9, %cst_47 {dimension_numbers = #tpu.dot_dimension_numbers<[1], [0], [0], [1], [0, 0, 1, 1], [], []>} : vector<8x32xf32>, vector<32x128xf32>, vector<8x128xf32> -> vector<8x128xf32>
    %175 = arith.addf %173, %174 : vector<8x128xf32>
    %176 = arith.negf %175 : vector<8x128xf32>
    %177 = math.exp %176 : vector<8x128xf32>
    %cst_48 = arith.constant 1.000000e+00 : f32
    %178 = vector.broadcast %cst_48 : f32 to vector<8x128xf32>
    %179 = arith.addf %178, %177 : vector<8x128xf32>
    %180 = arith.divf %178, %179 : vector<8x128xf32>
    %181 = math.tanh %175 : vector<8x128xf32>
    %182 = vector.extract_strided_slice %180 {offsets = [0, 0], sizes = [8, 32], strides = [1, 1]} : vector<8x128xf32> to vector<8x32xf32>
    %183 = vector.extract_strided_slice %180 {offsets = [0, 32], sizes = [8, 32], strides = [1, 1]} : vector<8x128xf32> to vector<8x32xf32>
    %184 = vector.extract_strided_slice %181 {offsets = [0, 64], sizes = [8, 32], strides = [1, 1]} : vector<8x128xf32> to vector<8x32xf32>
    %185 = vector.extract_strided_slice %180 {offsets = [0, 96], sizes = [8, 32], strides = [1, 1]} : vector<8x128xf32> to vector<8x32xf32>
    %186 = arith.mulf %183, %149 : vector<8x32xf32>
    %187 = arith.mulf %182, %184 : vector<8x32xf32>
    %188 = arith.addf %186, %187 : vector<8x32xf32>
    %189 = math.tanh %188 : vector<8x32xf32>
    %190 = arith.mulf %185, %189 : vector<8x32xf32>
    %cst_49 = arith.constant dense<0.000000e+00> : vector<8x128xf32>
    %191 = tpu.matmul %190, %10, %cst_49 {dimension_numbers = #tpu.dot_dimension_numbers<[1], [0], [0], [1], [0, 0, 1, 1], [], []>} : vector<8x32xf32>, vector<32x128xf32>, vector<8x128xf32> -> vector<8x128xf32>
    %cst_50 = arith.constant dense<0.000000e+00> : vector<8x128xf32>
    %192 = tpu.matmul %171, %11, %cst_50 {dimension_numbers = #tpu.dot_dimension_numbers<[1], [0], [0], [1], [0, 0, 1, 1], [], []>} : vector<8x32xf32>, vector<32x128xf32>, vector<8x128xf32> -> vector<8x128xf32>
    %193 = arith.addf %191, %192 : vector<8x128xf32>
    %194 = vector.broadcast %12 : vector<1x128xf32> to vector<8x128xf32>
    %195 = arith.addf %193, %194 : vector<8x128xf32>
    %196 = arith.negf %195 : vector<8x128xf32>
    %197 = math.exp %196 : vector<8x128xf32>
    %cst_51 = arith.constant 1.000000e+00 : f32
    %198 = vector.broadcast %cst_51 : f32 to vector<8x128xf32>
    %199 = arith.addf %198, %197 : vector<8x128xf32>
    %200 = arith.divf %198, %199 : vector<8x128xf32>
    %201 = math.tanh %195 : vector<8x128xf32>
    %202 = vector.extract_strided_slice %200 {offsets = [0, 0], sizes = [8, 32], strides = [1, 1]} : vector<8x128xf32> to vector<8x32xf32>
    %203 = vector.extract_strided_slice %200 {offsets = [0, 32], sizes = [8, 32], strides = [1, 1]} : vector<8x128xf32> to vector<8x32xf32>
    %204 = vector.extract_strided_slice %201 {offsets = [0, 64], sizes = [8, 32], strides = [1, 1]} : vector<8x128xf32> to vector<8x32xf32>
    %205 = vector.extract_strided_slice %200 {offsets = [0, 96], sizes = [8, 32], strides = [1, 1]} : vector<8x128xf32> to vector<8x32xf32>
    %206 = arith.mulf %203, %169 : vector<8x32xf32>
    %207 = arith.mulf %202, %204 : vector<8x32xf32>
    %208 = arith.addf %206, %207 : vector<8x32xf32>
    %209 = math.tanh %208 : vector<8x32xf32>
    %210 = arith.mulf %205, %209 : vector<8x32xf32>
    %c32 = arith.constant 32 : index
    %c0_52 = arith.constant 0 : index
    %211 = vector.load %arg15[%c32, %c0_52] : memref<48x32xf32, #tpu.memory_space<vmem>>, vector<8x32xf32>
    tpu.vector_store %arg15[%c32, %c0_52], %210 {strides = array<i32>} : memref<48x32xf32, #tpu.memory_space<vmem>>, vector<8x32xf32>,
    %212 = vector.extract_strided_slice %8 {offsets = [40, 0], sizes = [8, 128], strides = [1, 1]} : vector<48x128xf32> to vector<8x128xf32>
    %cst_53 = arith.constant dense<0.000000e+00> : vector<8x128xf32>
    %213 = tpu.matmul %190, %9, %cst_53 {dimension_numbers = #tpu.dot_dimension_numbers<[1], [0], [0], [1], [0, 0, 1, 1], [], []>} : vector<8x32xf32>, vector<32x128xf32>, vector<8x128xf32> -> vector<8x128xf32>
    %214 = arith.addf %212, %213 : vector<8x128xf32>
    %215 = arith.negf %214 : vector<8x128xf32>
    %216 = math.exp %215 : vector<8x128xf32>
    %cst_54 = arith.constant 1.000000e+00 : f32
    %217 = vector.broadcast %cst_54 : f32 to vector<8x128xf32>
    %218 = arith.addf %217, %216 : vector<8x128xf32>
    %219 = arith.divf %217, %218 : vector<8x128xf32>
    %220 = math.tanh %214 : vector<8x128xf32>
    %221 = vector.extract_strided_slice %219 {offsets = [0, 0], sizes = [8, 32], strides = [1, 1]} : vector<8x128xf32> to vector<8x32xf32>
    %222 = vector.extract_strided_slice %219 {offsets = [0, 32], sizes = [8, 32], strides = [1, 1]} : vector<8x128xf32> to vector<8x32xf32>
    %223 = vector.extract_strided_slice %220 {offsets = [0, 64], sizes = [8, 32], strides = [1, 1]} : vector<8x128xf32> to vector<8x32xf32>
    %224 = vector.extract_strided_slice %219 {offsets = [0, 96], sizes = [8, 32], strides = [1, 1]} : vector<8x128xf32> to vector<8x32xf32>
    %225 = arith.mulf %222, %188 : vector<8x32xf32>
    %226 = arith.mulf %221, %223 : vector<8x32xf32>
    %227 = arith.addf %225, %226 : vector<8x32xf32>
    %228 = math.tanh %227 : vector<8x32xf32>
    %229 = arith.mulf %224, %228 : vector<8x32xf32>
    %cst_55 = arith.constant dense<0.000000e+00> : vector<8x128xf32>
    %230 = tpu.matmul %229, %10, %cst_55 {dimension_numbers = #tpu.dot_dimension_numbers<[1], [0], [0], [1], [0, 0, 1, 1], [], []>} : vector<8x32xf32>, vector<32x128xf32>, vector<8x128xf32> -> vector<8x128xf32>
    %cst_56 = arith.constant dense<0.000000e+00> : vector<8x128xf32>
    %231 = tpu.matmul %210, %11, %cst_56 {dimension_numbers = #tpu.dot_dimension_numbers<[1], [0], [0], [1], [0, 0, 1, 1], [], []>} : vector<8x32xf32>, vector<32x128xf32>, vector<8x128xf32> -> vector<8x128xf32>
    %232 = arith.addf %230, %231 : vector<8x128xf32>
    %233 = vector.broadcast %12 : vector<1x128xf32> to vector<8x128xf32>
    %234 = arith.addf %232, %233 : vector<8x128xf32>
    %235 = arith.negf %234 : vector<8x128xf32>
    %236 = math.exp %235 : vector<8x128xf32>
    %cst_57 = arith.constant 1.000000e+00 : f32
    %237 = vector.broadcast %cst_57 : f32 to vector<8x128xf32>
    %238 = arith.addf %237, %236 : vector<8x128xf32>
    %239 = arith.divf %237, %238 : vector<8x128xf32>
    %240 = math.tanh %234 : vector<8x128xf32>
    %241 = vector.extract_strided_slice %239 {offsets = [0, 0], sizes = [8, 32], strides = [1, 1]} : vector<8x128xf32> to vector<8x32xf32>
    %242 = vector.extract_strided_slice %239 {offsets = [0, 32], sizes = [8, 32], strides = [1, 1]} : vector<8x128xf32> to vector<8x32xf32>
    %243 = vector.extract_strided_slice %240 {offsets = [0, 64], sizes = [8, 32], strides = [1, 1]} : vector<8x128xf32> to vector<8x32xf32>
    %244 = vector.extract_strided_slice %239 {offsets = [0, 96], sizes = [8, 32], strides = [1, 1]} : vector<8x128xf32> to vector<8x32xf32>
    %245 = arith.mulf %242, %208 : vector<8x32xf32>
    %246 = arith.mulf %241, %243 : vector<8x32xf32>
    %247 = arith.addf %245, %246 : vector<8x32xf32>
    %248 = math.tanh %247 : vector<8x32xf32>
    %249 = arith.mulf %244, %248 : vector<8x32xf32>
    %c40 = arith.constant 40 : index
    %c0_58 = arith.constant 0 : index
    %250 = vector.load %arg15[%c40, %c0_58] : memref<48x32xf32, #tpu.memory_space<vmem>>, vector<8x32xf32>
    tpu.vector_store %arg15[%c40, %c0_58], %249 {strides = array<i32>} : memref<48x32xf32, #tpu.memory_space<vmem>>, vector<8x32xf32>,
    %c0_59 = arith.constant 0 : index
    %c0_60 = arith.constant 0 : index
    %251 = vector.load %arg11[%c0_59, %c0_60] : memref<8x32xf32, #tpu.memory_space<vmem>>, vector<8x32xf32>
    tpu.vector_store %arg11[%c0_59, %c0_60], %229 {strides = array<i32>} : memref<8x32xf32, #tpu.memory_space<vmem>>, vector<8x32xf32>,
    %c0_61 = arith.constant 0 : index
    %c0_62 = arith.constant 0 : index
    %252 = vector.load %arg12[%c0_61, %c0_62] : memref<8x32xf32, #tpu.memory_space<vmem>>, vector<8x32xf32>
    tpu.vector_store %arg12[%c0_61, %c0_62], %227 {strides = array<i32>} : memref<8x32xf32, #tpu.memory_space<vmem>>, vector<8x32xf32>,
    %c0_63 = arith.constant 0 : index
    %c0_64 = arith.constant 0 : index
    %253 = vector.load %arg13[%c0_63, %c0_64] : memref<8x32xf32, #tpu.memory_space<vmem>>, vector<8x32xf32>
    tpu.vector_store %arg13[%c0_63, %c0_64], %249 {strides = array<i32>} : memref<8x32xf32, #tpu.memory_space<vmem>>, vector<8x32xf32>,
    %c0_65 = arith.constant 0 : index
    %c0_66 = arith.constant 0 : index
    %254 = vector.load %arg14[%c0_65, %c0_66] : memref<8x32xf32, #tpu.memory_space<vmem>>, vector<8x32xf32>
    tpu.vector_store %arg14[%c0_65, %c0_66], %247 {strides = array<i32>} : memref<8x32xf32, #tpu.memory_space<vmem>>, vector<8x32xf32>,
    %c0_67 = arith.constant 0 : index
    %c0_68 = arith.constant 0 : index
    %255 = vector.load %arg15[%c0_67, %c0_68] : memref<48x32xf32, #tpu.memory_space<vmem>>, vector<48x32xf32>
    %c0_69 = arith.constant 0 : index
    %c0_70 = arith.constant 0 : index
    %256 = vector.load %arg8[%c0_69, %c0_70] : memref<32x128xf32, #tpu.memory_space<vmem>>, vector<32x128xf32>
    %cst_71 = arith.constant dense<0.000000e+00> : vector<48x128xf32>
    %257 = tpu.matmul %255, %256, %cst_71 {dimension_numbers = #tpu.dot_dimension_numbers<[1], [0], [0], [1], [0, 0, 1, 1], [], []>} : vector<48x32xf32>, vector<32x128xf32>, vector<48x128xf32> -> vector<48x128xf32>
    %c0_72 = arith.constant 0 : index
    %c0_73 = arith.constant 0 : index
    %258 = vector.load %arg9[%c0_72, %c0_73] : memref<1x128xf32, #tpu.memory_space<vmem>>, vector<1x128xf32>
    %259 = vector.broadcast %258 : vector<1x128xf32> to vector<48x128xf32>
    %260 = arith.addf %257, %259 : vector<48x128xf32>
    %c0_74 = arith.constant 0 : index
    %c0_75 = arith.constant 0 : index
    %261 = vector.load %arg10[%c0_74, %c0_75] : memref<48x128xf32, #tpu.memory_space<vmem>>, vector<48x128xf32>
    tpu.vector_store %arg10[%c0_74, %c0_75], %260 {strides = array<i32>} : memref<48x128xf32, #tpu.memory_space<vmem>>, vector<48x128xf32>,
    return
  }
  func.func @transform_0(%arg0: i32) -> (i32, i32) {
    %c0_i32 = arith.constant 0 : i32
    %c0_i32_0 = arith.constant 0 : i32
    return %arg0, %c0_i32 : i32, i32
  }
  func.func @transform_1(%arg0: i32) -> (i32, i32) {
    %c0_i32 = arith.constant 0 : i32
    %c0_i32_0 = arith.constant 0 : i32
    %c0_i32_1 = arith.constant 0 : i32
    return %c0_i32, %c0_i32_0 : i32, i32
  }
  func.func @transform_2(%arg0: i32) -> (i32, i32) {
    %c0_i32 = arith.constant 0 : i32
    %c0_i32_0 = arith.constant 0 : i32
    %c0_i32_1 = arith.constant 0 : i32
    return %c0_i32, %c0_i32_0 : i32, i32
  }
  func.func @transform_3(%arg0: i32) -> (i32, i32) {
    %c0_i32 = arith.constant 0 : i32
    %c0_i32_0 = arith.constant 0 : i32
    %c0_i32_1 = arith.constant 0 : i32
    return %c0_i32, %c0_i32_0 : i32, i32
  }
  func.func @transform_4(%arg0: i32) -> (i32, i32) {
    %c0_i32 = arith.constant 0 : i32
    %c0_i32_0 = arith.constant 0 : i32
    %c0_i32_1 = arith.constant 0 : i32
    return %c0_i32, %c0_i32_0 : i32, i32
  }
  func.func @transform_5(%arg0: i32) -> (i32, i32) {
    %c0_i32 = arith.constant 0 : i32
    %c0_i32_0 = arith.constant 0 : i32
    %c0_i32_1 = arith.constant 0 : i32
    return %c0_i32, %c0_i32_0 : i32, i32
  }
  func.func @transform_6(%arg0: i32) -> (i32, i32) {
    %c0_i32 = arith.constant 0 : i32
    %c0_i32_0 = arith.constant 0 : i32
    %c0_i32_1 = arith.constant 0 : i32
    return %c0_i32, %c0_i32_0 : i32, i32
  }
  func.func @transform_7(%arg0: i32) -> (i32, i32) {
    %c0_i32 = arith.constant 0 : i32
    %c0_i32_0 = arith.constant 0 : i32
    %c0_i32_1 = arith.constant 0 : i32
    return %c0_i32, %c0_i32_0 : i32, i32
  }
  func.func @transform_8(%arg0: i32) -> (i32, i32) {
    %c0_i32 = arith.constant 0 : i32
    %c0_i32_0 = arith.constant 0 : i32
    %c0_i32_1 = arith.constant 0 : i32
    return %c0_i32, %c0_i32_0 : i32, i32
  }
  func.func @transform_9(%arg0: i32) -> (i32, i32) {
    %c0_i32 = arith.constant 0 : i32
    %c0_i32_0 = arith.constant 0 : i32
    return %arg0, %c0_i32 : i32, i32
  }
}

</mosaic_0001>

<llo_original>
// kernel: net_shampoo_forward.1
$region0: #{net_shampoo_forward.1}
  #allocation0 [shape = 'u32[]', space=smem, size = 0x4, offset = 0x4, fixed_abs, tag = 'smem constant byte address 0x4 - core index']
  #allocation1 [shape = 'u32[144,128]{1,0:T(1,128)}', space=vmem, size = 0x12000, scoped, tag = 'internal scratch']
  #allocation2 [shape = 'f32[8,32]{1,0:T(8,128)}', space=vmem, size = 0x1000, scoped, tag = 'scratch operand']
  #allocation3 [shape = 'f32[8,32]{1,0:T(8,128)}', space=vmem, size = 0x1000, scoped, tag = 'scratch operand']
  #allocation4 [shape = 'f32[8,32]{1,0:T(8,128)}', space=vmem, size = 0x1000, scoped, tag = 'scratch operand']
  #allocation5 [shape = 'f32[8,32]{1,0:T(8,128)}', space=vmem, size = 0x1000, scoped, tag = 'scratch operand']
  #allocation6 [shape = 'f32[48,32]{1,0:T(8,128)}', space=vmem, size = 0x6000, scoped, tag = 'scratch operand']
  %s0 = inlined_call_operand.vmem [shape: f32[96,4], index: 0, kind: input, shape index: {}]
  %s1 = inlined_call_operand.vmem [shape: f32[4,128], index: 1, kind: input, shape index: {}]
  %s2 = inlined_call_operand.vmem [shape: f32[1,128], index: 2, kind: input, shape index: {}]
  %s3 = inlined_call_operand.vmem [shape: f32[32,128], index: 3, kind: input, shape index: {}]
  %s4 = inlined_call_operand.vmem [shape: f32[32,128], index: 4, kind: input, shape index: {}]
  %s5 = inlined_call_operand.vmem [shape: f32[32,128], index: 5, kind: input, shape index: {}]
  %s6 = inlined_call_operand.vmem [shape: f32[1,128], index: 6, kind: input, shape index: {}]
  %s7 = inlined_call_operand.vmem [shape: f32[32,128], index: 7, kind: input, shape index: {}]
  %s8 = inlined_call_operand.vmem [shape: f32[1,128], index: 8, kind: input, shape index: {}]
  %s9 = inlined_call_operand.vmem [shape: f32[96,128], index: 9, kind: output, shape index: {}]
  %s10 = sld [smem:[#allocation0]]
  $region73: #{net_shampoo_forward.1} parent=0
    _
  %s12 = ssub.s32 1, %s10
  %s13 = scalar_select 0, %s12, %s10
  loop: start=0, step=1, limit=4
  $region2: #{net_shampoo_forward.1} parent=0 // loop_pre_header
    _
  $region3: #{net_shampoo_forward.1} parent=0 // loop_header
    %s15 = sphi 0, %s19
    %p16 = scmp.ge.s32.totalorder %s15, 4
    %s25 = sphi 0, %s27
    %s28 = sphi 0, %s25
    %s29 = sphi 0, %s28
    %s45 = sphi 0, %s29
    %s49 = sphi 0, %s49
    %s51 = sphi 0, %s49
    %s52 = sphi 0, %s51
    %s66 = sphi 0, %s52
    %s70 = sphi 0, %s70
    %s72 = sphi 0, %s70
    %s73 = sphi 0, %s72
    %s87 = sphi 0, %s73
    %s91 = sphi 0, %s91
    %s93 = sphi 0, %s91
    %s94 = sphi 0, %s93
    %s108 = sphi 0, %s94
    %s112 = sphi 0, %s112
    %s114 = sphi 0, %s112
    %s115 = sphi 0, %s114
    %s129 = sphi 0, %s115
    %s133 = sphi 0, %s133
    %s135 = sphi 0, %s133
    %s136 = sphi 0, %s135
    %s150 = sphi 0, %s136
    %s154 = sphi 0, %s154
    %s156 = sphi 0, %s154
    %s157 = sphi 0, %s156
    %s171 = sphi 0, %s157
    %s175 = sphi 0, %s175
    %s177 = sphi 0, %s175
    %s178 = sphi 0, %s177
    %s192 = sphi 0, %s178
    %s196 = sphi 0, %s196
    %s198 = sphi 0, %s196
    %s199 = sphi 0, %s198
    %s213 = sphi 0, %s199
    %s219 = sphi 0, %s221
    %s222 = sphi 0, %s219
    %s223 = sphi 0, %s222
    %s239 = sphi 0, %s223
  $region4: #{net_shampoo_forward.1} parent=0 // loop_header_branch
    %18 = sbr.rel (%p16) target = $region8
  $region5: #{net_shampoo_forward.1} parent=0 // loop_body
    %s20 = ssub.s32 %s15, 1
    %s21 = ssub.s32 %s15, 2
    %s22 = sadd.s32 %s15, 1
    %s23 = ssub.s32 %s15, %s22
    %p24 = scmp.eq.s32.totalorder %s23, 0
    %s26 = sadd.s32 %s25, 1
    %s27 = scalar_select %p24, %s25, %s26
    %p30 = pneg %p24
    %p31 = scmp.eq.s32.totalorder %s15, 1
    %p32 = por %p30, %p31
    %p33 = scmp.ne.s32.totalorder %s25, %s28
    %p34 = scmp.eq.s32.totalorder %s15, 0
    %p35 = por %p33, %p34
    %p36 = scmp.ne.s32.totalorder %s25, %s28
    %p37 = scmp.eq.s32.totalorder %s20, 1
    %p38 = por %p36, %p37
    %p39 = scmp.ne.s32.totalorder %s28, %s29
    %p40 = scmp.eq.s32.totalorder %s20, 0
    %p41 = por %p39, %p40
    %p42 = scmp.ne.s32.totalorder %s28, %s29
    %p43 = scmp.eq.s32.totalorder %s21, 1
    %p44 = por %p42, %p43
    %p46 = scmp.ne.s32.totalorder %s29, %s45
    %p47 = scmp.eq.s32.totalorder %s21, 0
    %p48 = por %p46, %p47
    %s50 = sadd.s32 %s49, 1
    %p53 = scmp.eq.s32.totalorder %s15, 1
    %p54 = scmp.ne.s32.totalorder %s49, %s51
    %p55 = scmp.eq.s32.totalorder %s15, 0
    %p56 = por %p54, %p55
    %p57 = scmp.ne.s32.totalorder %s49, %s51
    %p58 = scmp.eq.s32.totalorder %s20, 1
    %p59 = por %p57, %p58
    %p60 = scmp.ne.s32.totalorder %s51, %s52
    %p61 = scmp.eq.s32.totalorder %s20, 0
    %p62 = por %p60, %p61
    %p63 = scmp.ne.s32.totalorder %s51, %s52
    %p64 = scmp.eq.s32.totalorder %s21, 1
    %p65 = por %p63, %p64
    %p67 = scmp.ne.s32.totalorder %s52, %s66
    %p68 = scmp.eq.s32.totalorder %s21, 0
    %p69 = por %p67, %p68
    %s71 = sadd.s32 %s70, 1
    %p74 = scmp.eq.s32.totalorder %s15, 1
    %p75 = scmp.ne.s32.totalorder %s70, %s72
    %p76 = scmp.eq.s32.totalorder %s15, 0
    %p77 = por %p75, %p76
    %p78 = scmp.ne.s32.totalorder %s70, %s72
    %p79 = scmp.eq.s32.totalorder %s20, 1
    %p80 = por %p78, %p79
    %p81 = scmp.ne.s32.totalorder %s72, %s73
    %p82 = scmp.eq.s32.totalorder %s20, 0
    %p83 = por %p81, %p82
    %p84 = scmp.ne.s32.totalorder %s72, %s73
    %p85 = scmp.eq.s32.totalorder %s21, 1
    %p86 = por %p84, %p85
    %p88 = scmp.ne.s32.totalorder %s73, %s87
    %p89 = scmp.eq.s32.totalorder %s21, 0
    %p90 = por %p88, %p89
    %s92 = sadd.s32 %s91, 1
    %p95 = scmp.eq.s32.totalorder %s15, 1
    %p96 = scmp.ne.s32.totalorder %s91, %s93
    %p97 = scmp.eq.s32.totalorder %s15, 0
    %p98 = por %p96, %p97
    %p99 = scmp.ne.s32.totalorder %s91, %s93
    %p100 = scmp.eq.s32.totalorder %s20, 1
    %p101 = por %p99, %p100
    %p102 = scmp.ne.s32.totalorder %s93, %s94
    %p103 = scmp.eq.s32.totalorder %s20, 0
    %p104 = por %p102, %p103
    %p105 = scmp.ne.s32.totalorder %s93, %s94
    %p106 = scmp.eq.s32.totalorder %s21, 1
    %p107 = por %p105, %p106
    %p109 = scmp.ne.s32.totalorder %s94, %s108
    %p110 = scmp.eq.s32.totalorder %s21, 0
    %p111 = por %p109, %p110
    %s113 = sadd.s32 %s112, 1
    %p116 = scmp.eq.s32.totalorder %s15, 1
    %p117 = scmp.ne.s32.totalorder %s112, %s114
    %p118 = scmp.eq.s32.totalorder %s15, 0
    %p119 = por %p117, %p118
    %p120 = scmp.ne.s32.totalorder %s112, %s114
    %p121 = scmp.eq.s32.totalorder %s20, 1
    %p122 = por %p120, %p121
    %p123 = scmp.ne.s32.totalorder %s114, %s115
    %p124 = scmp.eq.s32.totalorder %s20, 0
    %p125 = por %p123, %p124
    %p126 = scmp.ne.s32.totalorder %s114, %s115
    %p127 = scmp.eq.s32.totalorder %s21, 1
    %p128 = por %p126, %p127
    %p130 = scmp.ne.s32.totalorder %s115, %s129
    %p131 = scmp.eq.s32.totalorder %s21, 0
    %p132 = por %p130, %p131
    %s134 = sadd.s32 %s133, 1
    %p137 = scmp.eq.s32.totalorder %s15, 1
    %p138 = scmp.ne.s32.totalorder %s133, %s135
    %p139 = scmp.eq.s32.totalorder %s15, 0
    %p140 = por %p138, %p139
    %p141 = scmp.ne.s32.totalorder %s133, %s135
    %p142 = scmp.eq.s32.totalorder %s20, 1
    %p143 = por %p141, %p142
    %p144 = scmp.ne.s32.totalorder %s135, %s136
    %p145 = scmp.eq.s32.totalorder %s20, 0
    %p146 = por %p144, %p145
    %p147 = scmp.ne.s32.totalorder %s135, %s136
    %p148 = scmp.eq.s32.totalorder %s21, 1
    %p149 = por %p147, %p148
    %p151 = scmp.ne.s32.totalorder %s136, %s150
    %p152 = scmp.eq.s32.totalorder %s21, 0
    %p153 = por %p151, %p152
    %s155 = sadd.s32 %s154, 1
    %p158 = scmp.eq.s32.totalorder %s15, 1
    %p159 = scmp.ne.s32.totalorder %s154, %s156
    %p160 = scmp.eq.s32.totalorder %s15, 0
    %p161 = por %p159, %p160
    %p162 = scmp.ne.s32.totalorder %s154, %s156
    %p163 = scmp.eq.s32.totalorder %s20, 1
    %p164 = por %p162, %p163
    %p165 = scmp.ne.s32.totalorder %s156, %s157
    %p166 = scmp.eq.s32.totalorder %s20, 0
    %p167 = por %p165, %p166
    %p168 = scmp.ne.s32.totalorder %s156, %s157
    %p169 = scmp.eq.s32.totalorder %s21, 1
    %p170 = por %p168, %p169
    %p172 = scmp.ne.s32.totalorder %s157, %s171
    %p173 = scmp.eq.s32.totalorder %s21, 0
    %p174 = por %p172, %p173
    %s176 = sadd.s32 %s175, 1
    %p179 = scmp.eq.s32.totalorder %s15, 1
    %p180 = scmp.ne.s32.totalorder %s175, %s177
    %p181 = scmp.eq.s32.totalorder %s15, 0
    %p182 = por %p180, %p181
    %p183 = scmp.ne.s32.totalorder %s175, %s177
    %p184 = scmp.eq.s32.totalorder %s20, 1
    %p185 = por %p183, %p184
    %p186 = scmp.ne.s32.totalorder %s177, %s178
    %p187 = scmp.eq.s32.totalorder %s20, 0
    %p188 = por %p186, %p187
    %p189 = scmp.ne.s32.totalorder %s177, %s178
    %p190 = scmp.eq.s32.totalorder %s21, 1
    %p191 = por %p189, %p190
    %p193 = scmp.ne.s32.totalorder %s178, %s192
    %p194 = scmp.eq.s32.totalorder %s21, 0
    %p195 = por %p193, %p194
    %s197 = sadd.s32 %s196, 1
    %p200 = scmp.eq.s32.totalorder %s15, 1
    %p201 = scmp.ne.s32.totalorder %s196, %s198
    %p202 = scmp.eq.s32.totalorder %s15, 0
    %p203 = por %p201, %p202
    %p204 = scmp.ne.s32.totalorder %s196, %s198
    %p205 = scmp.eq.s32.totalorder %s20, 1
    %p206 = por %p204, %p205
    %p207 = scmp.ne.s32.totalorder %s198, %s199
    %p208 = scmp.eq.s32.totalorder %s20, 0
    %p209 = por %p207, %p208
    %p210 = scmp.ne.s32.totalorder %s198, %s199
    %p211 = scmp.eq.s32.totalorder %s21, 1
    %p212 = por %p210, %p211
    %p214 = scmp.ne.s32.totalorder %s199, %s213
    %p215 = scmp.eq.s32.totalorder %s21, 0
    %p216 = por %p214, %p215
    %s217 = ssub.s32 %s15, %s22
    %p218 = scmp.eq.s32.totalorder %s217, 0
    %s220 = sadd.s32 %s219, 1
    %s221 = scalar_select %p218, %s219, %s220
    %p224 = pneg %p218
    %p225 = scmp.eq.s32.totalorder %s15, 1
    %p226 = por %p224, %p225
    %p227 = scmp.ne.s32.totalorder %s219, %s222
    %p228 = scmp.eq.s32.totalorder %s15, 0
    %p229 = por %p227, %p228
    %p230 = scmp.ne.s32.totalorder %s219, %s222
    %p231 = scmp.eq.s32.totalorder %s20, 1
    %p232 = por %p230, %p231
    %p233 = scmp.ne.s32.totalorder %s222, %s223
    %p234 = scmp.eq.s32.totalorder %s20, 0
    %p235 = por %p233, %p234
    %p236 = scmp.ne.s32.totalorder %s222, %s223
    %p237 = scmp.eq.s32.totalorder %s21, 1
    %p238 = por %p236, %p237
    %p240 = scmp.ne.s32.totalorder %s223, %s239
    %p241 = scmp.eq.s32.totalorder %s21, 0
    %p242 = por %p240, %p241
    %p243 = scmp.le.s32.totalorder 1, %s15
    %p244 = scmp.lt.s32.totalorder %s15, 3
    %p245 = pnand %p243, %p244
    %p246 = pneg %p245
    // Predicated region
    $region9: #{net_shampoo_forward.1} parent=5 // pred_check
      _
    $region10: #{net_shampoo_forward.1} parent=5 // pred_check_branch
      %248 = sbr.rel (%p245) target = $region12
    $region11: #{net_shampoo_forward.1} parent=5 // pred_region
      %s249 = ssub.s32 %s15, 1
      // Predicated region
      $region13: #{net_shampoo_forward.1} parent=11 // pred_check
        %p250 = pneg %p62
      $region14: #{net_shampoo_forward.1} parent=11 // pred_check_branch
        %252 = sbr.rel (%p250) target = $region16
      $region15: #{net_shampoo_forward.1} parent=11 // pred_region
        _
      $region16: #{net_shampoo_forward.1} parent=11 // pred_fallthru
        _
      // Predicated region
      $region17: #{net_shampoo_forward.1} parent=11 // pred_check
        %p253 = pneg %p83
      $region18: #{net_shampoo_forward.1} parent=11 // pred_check_branch
        %255 = sbr.rel (%p253) target = $region20
      $region19: #{net_shampoo_forward.1} parent=11 // pred_region
        _
      $region20: #{net_shampoo_forward.1} parent=11 // pred_fallthru
        _
      // Predicated region
      $region21: #{net_shampoo_forward.1} parent=11 // pred_check
        %p256 = pneg %p104
      $region22: #{net_shampoo_forward.1} parent=11 // pred_check_branch
        %258 = sbr.rel (%p256) target = $region24
      $region23: #{net_shampoo_forward.1} parent=11 // pred_region
        _
      $region24: #{net_shampoo_forward.1} parent=11 // pred_fallthru
        _
      // Predicated region
      $region25: #{net_shampoo_forward.1} parent=11 // pred_check
        %p259 = pneg %p125
      $region26: #{net_shampoo_forward.1} parent=11 // pred_check_branch
        %261 = sbr.rel (%p259) target = $region28
      $region27: #{net_shampoo_forward.1} parent=11 // pred_region
        _
      $region28: #{net_shampoo_forward.1} parent=11 // pred_fallthru
        _
      // Predicated region
      $region29: #{net_shampoo_forward.1} parent=11 // pred_check
        %p262 = pneg %p146
      $region30: #{net_shampoo_forward.1} parent=11 // pred_check_branch
        %264 = sbr.rel (%p262) target = $region32
      $region31: #{net_shampoo_forward.1} parent=11 // pred_region
        _
      $region32: #{net_shampoo_forward.1} parent=11 // pred_fallthru
        _
      // Predicated region
      $region33: #{net_shampoo_forward.1} parent=11 // pred_check
        %p265 = pneg %p167
      $region34: #{net_shampoo_forward.1} parent=11 // pred_check_branch
        %267 = sbr.rel (%p265) target = $region36
      $region35: #{net_shampoo_forward.1} parent=11 // pred_region
        _
      $region36: #{net_shampoo_forward.1} parent=11 // pred_fallthru
        _
      // Predicated region
      $region37: #{net_shampoo_forward.1} parent=11 // pred_check
        %p268 = pneg %p188
      $region38: #{net_shampoo_forward.1} parent=11 // pred_check_branch
        %270 = sbr.rel (%p268) target = $region40
      $region39: #{net_shampoo_forward.1} parent=11 // pred_region
        _
      $region40: #{net_shampoo_forward.1} parent=11 // pred_fallthru
        _
      // Predicated region
      $region41: #{net_shampoo_forward.1} parent=11 // pred_check
        %p271 = pneg %p209
      $region42: #{net_shampoo_forward.1} parent=11 // pred_check_branch
        %273 = sbr.rel (%p271) target = $region44
      $region43: #{net_shampoo_forward.1} parent=11 // pred_region
        _
      $region44: #{net_shampoo_forward.1} parent=11 // pred_fallthru
        _
    $region12: #{net_shampoo_forward.1} parent=5 // pred_fallthru
      _
    %p274 = scmp.lt.s32.totalorder %s15, 2
    // Predicated region
    $region45: #{net_shampoo_forward.1} parent=5 // pred_check
      %p275 = pneg %p274
    $region46: #{net_shampoo_forward.1} parent=5 // pred_check_branch
      %277 = sbr.rel (%p275) target = $region48
    $region47: #{net_shampoo_forward.1} parent=5 // pred_region
      // Predicated region
      $region49: #{net_shampoo_forward.1} parent=47 // pred_check
        %p278 = pneg %p35
      $region50: #{net_shampoo_forward.1} parent=47 // pred_check_branch
        %280 = sbr.rel (%p278) target = $region52
      $region51: #{net_shampoo_forward.1} parent=47 // pred_region
        %s281 = smul.u32 6, %s15
        %p282 = scmp.lt.s32.totalorder %s281, 11
        %s283 = scalar_select %p282, %s281, 11
        %s284 = smul.addr %s283, 8
        %s285 = scalar_lea.vmem %s0, %s284
        %s286 = smul.u32 6, %s15
      $region52: #{net_shampoo_forward.1} parent=47 // pred_fallthru
        _
    $region48: #{net_shampoo_forward.1} parent=5 // pred_fallthru
      _
    %p287 = scmp.le.s32.totalorder 1, %s15
    %p288 = scmp.lt.s32.totalorder %s15, 3
    %p289 = pnand %p287, %p288
    %p290 = pneg %p289
    // Predicated region
    $region53: #{net_shampoo_forward.1} parent=5 // pred_check
      _
    $region54: #{net_shampoo_forward.1} parent=5 // pred_check_branch
      %292 = sbr.rel (%p289) target = $region56
    $region55: #{net_shampoo_forward.1} parent=5 // pred_region
      %s293 = ssub.s32 %s15, 1
      %s294 = smul.u32 6, %s20
      %p295 = scmp.lt.s32.totalorder %s294, 11
      %s296 = scalar_select %p295, %s294, 11
      %s297 = smul.addr %s296, 8
      %s298 = scalar_lea.vmem %s0, %s297
      %p299 = pneg %p41
      %p300 = pneg %p38
      %p301 = pneg %p62
      %p302 = pneg %p59
      %p303 = pneg %p83
      %p304 = pneg %p80
      %p305 = pneg %p104
      %p306 = pneg %p101
      %p307 = pneg %p125
      %p308 = pneg %p122
      %p309 = pneg %p146
      %p310 = pneg %p143
      %p311 = pneg %p167
      %p312 = pneg %p164
      %p313 = pneg %p188
      %p314 = pneg %p185
      %p315 = pneg %p209
      %p316 = pneg %p206
      %p317 = pneg %p235
      %p318 = pneg %p232
      %s319 = smul.u32 6, %s20
      %p320 = scmp.lt.s32.totalorder %s319, 11
      %s321 = scalar_select %p320, %s319, 11
      %s322 = smul.addr %s321, 8
      %s323 = scalar_lea.vmem %s9, %s322
      %s324 = smul.u32 6, %s20
      %p325 = scmp.lt.s32.totalorder %s324, 11
      %s326 = scalar_select %p325, %s324, 11
      %s327 = smul.addr %s326, 8
      %s328 = scalar_lea.vmem %s0, %s327
      %s329 = smul.u32 6, %s20
      %s330 = smul.u32 6, %s20
      %p331 = scmp.lt.s32.totalorder %s330, 11
      %s332 = scalar_select %p331, %s330, 11
      %s333 = smul.addr %s332, 8
      %s334 = scalar_lea.vmem %s9, %s333
      %s335 = smul.u32 6, %s20
      %p336 = scmp.eq.s32.totalorder %s20, 0
      // Predicated region
      $region57: #{net_shampoo_forward.1} parent=55 // pred_check
        %p337 = pneg %p336
      $region58: #{net_shampoo_forward.1} parent=55 // pred_check_branch
        %339 = sbr.rel (%p337) target = $region60
      $region59: #{net_shampoo_forward.1} parent=55 // pred_region
        %vm340 = vcmask 261120
        %341 = vst.msk [vmem:[#allocation2] sm:$0xff] %vm340, 0.0
        %342 = vst.msk [vmem:[#allocation3] sm:$0xff] %vm340, 0.0
        %343 = vst.msk [vmem:[#allocation4] sm:$0xff] %vm340, 0.0
        %344 = vst.msk [vmem:[#allocation5] sm:$0xff] %vm340, 0.0
      $region60: #{net_shampoo_forward.1} parent=55 // pred_fallthru
        _
      %v345 = vld [vmem:[%s328] sm:$0xff]
      %v346 = vld [vmem:[%s328 + $0x8] sm:$0xff]
      %v347 = vld [vmem:[%s328 + $0x10] sm:$0xff]
      %v348 = vld [vmem:[%s328 + $0x18] sm:$0xff]
      %v349 = vld [vmem:[%s328 + $0x20] sm:$0xff]
      %v350 = vld [vmem:[%s328 + $0x28] sm:$0xff]
      %v351 = vld [vmem:[%s1] sm:$0xf]
      %v352 = vld [vmem:[%s2] sm:$0x1]
      %v354 = vlaneseq
      %v355 = vshrl.u32 %v354, 7
      %v356 = vsub.s32 0, %v355
      %v357 = vrot.slane %v352, %v356
      %vm359 = vcmask 31744
      %v361 = vsel %vm359, %v345, 0
      %v364 = vsel %vm359, %v346, 0
      %v367 = vsel %vm359, %v347, 0
      %v370 = vsel %vm359, %v348, 0
      %v373 = vsel %vm359, %v349, 0
      %v376 = vsel %vm359, %v350, 0
      %vm378 = vcmask 1043456
      %v380 = vsel %vm378, %v351, 0
      %382 = vmatprep.subr.mxu0 0.0
      %383 = vmatpush1.msra.mxu0 0.0
      %384 = vmatprep.subr.mxu0 0.0
      %385 = vmatpush1.msra.mxu0 0.0
      %386 = vmatprep.subr.mxu0 0.0
      %387 = vmatpush1.msra.mxu0 0.0
      %388 = vmatprep.subr.mxu0 0.0
      %389 = vmatpush1.msra.mxu0 0.0
      %390 = vmatprep.subr.mxu0 0.0
      %391 = vmatpush1.msra.mxu0 0.0
      %392 = vmatprep.subr.mxu0 0.0
      %393 = vmatpush1.msra.mxu0 0.0
      %394 = vmatprep.subr.mxu0 0.0
      %395 = vmatpush1.msra.mxu0 0.0
      %396 = vmatprep.subr.mxu0 0.0
      %397 = vmatpush1.msra.mxu0 0.0
      %398 = vmatprep.subr.mxu0 0.0
      %399 = vmatpush1.msra.mxu0 0.0
      %400 = vmatprep.subr.mxu0 0.0
      %401 = vmatpush1.msra.mxu0 0.0
      %402 = vmatprep.subr.mxu0 0.0
      %403 = vmatpush1.msra.mxu0 0.0
      %404 = vmatprep.subr.mxu0 0.0
      %405 = vmatpush1.msra.mxu0 0.0
      %406 = vmatprep.subr.mxu0 0.0
      %407 = vmatpush1.msra.mxu0 0.0
      %408 = vmatprep.subr.mxu0 0.0
      %409 = vmatpush1.msra.mxu0 0.0
      %410 = vmatprep.subr.mxu0 0.0
      %411 = vmatpush1.msra.mxu0 0.0
      %412 = vmatprep.subr.mxu0 0.0
      %413 = vmatpush1.msra.mxu0 %v380
      %414 = vmatprep.subr.mxu0 0.0
      %415 = vmatpush2.msra.mxu0 0.0
      %416 = vmatprep.subr.mxu0 0.0
      %417 = vmatpush2.msra.mxu0 0.0
      %418 = vmatprep.subr.mxu0 0.0
      %419 = vmatpush2.msra.mxu0 0.0
      %420 = vmatprep.subr.mxu0 0.0
      %421 = vmatpush2.msra.mxu0 0.0
      %422 = vmatprep.subr.mxu0 0.0
      %423 = vmatpush2.msra.mxu0 0.0
      %424 = vmatprep.subr.mxu0 0.0
      %425 = vmatpush2.msra.mxu0 0.0
      %426 = vmatprep.subr.mxu0 0.0
      %427 = vmatpush2.msra.mxu0 0.0
      %428 = vmatprep.subr.mxu0 0.0
      %429 = vmatpush2.msra.mxu0 0.0
      %430 = vmatprep.subr.mxu0 0.0
      %431 = vmatpush2.msra.mxu0 0.0
      %432 = vmatprep.subr.mxu0 0.0
      %433 = vmatpush2.msra.mxu0 0.0
      %434 = vmatprep.subr.mxu0 0.0
      %435 = vmatpush2.msra.mxu0 0.0
      %436 = vmatprep.subr.mxu0 0.0
      %437 = vmatpush2.msra.mxu0 0.0
      %438 = vmatprep.subr.mxu0 0.0
      %439 = vmatpush2.msra.mxu0 0.0
      %440 = vmatprep.subr.mxu0 0.0
      %441 = vmatpush2.msra.mxu0 0.0
      %442 = vmatprep.subr.mxu0 0.0
      %443 = vmatpush2.msra.mxu0 0.0
      %444 = vmatprep.subr.mxu0 0.0
      %445 = vmatpush2.msra.mxu0 0.0
      %446 = vmatprep.mubr.f32.mxu0 0.0
      %447 = vmatmul.mubr.f32.gmra.mxu0 %v361
      %v448 = vpop.f32.mrf.mxu0
      %v449 = vadd.f32 %v357, %v448
      %v450 = vpop.f32.mrf.mxu0
      %451 = vmatprep.mubr.f32.mxu0 0.0
      %452 = vmatmul.mubr.f32.gmra.mxu0 %v364
      %v453 = vpop.f32.mrf.mxu0
      %v454 = vadd.f32 %v357, %v453
      %v455 = vpop.f32.mrf.mxu0
      %456 = vmatprep.mubr.f32.mxu0 0.0
      %457 = vmatmul.mubr.f32.gmra.mxu0 %v367
      %v458 = vpop.f32.mrf.mxu0
      %v459 = vadd.f32 %v357, %v458
      %v460 = vpop.f32.mrf.mxu0
      %461 = vmatprep.mubr.f32.mxu0 0.0
      %462 = vmatmul.mubr.f32.gmra.mxu0 %v370
      %v463 = vpop.f32.mrf.mxu0
      %v464 = vadd.f32 %v357, %v463
      %v465 = vpop.f32.mrf.mxu0
      %466 = vmatprep.mubr.f32.mxu0 0.0
      %467 = vmatmul.mubr.f32.gmra.mxu0 %v373
      %v468 = vpop.f32.mrf.mxu0
      %v469 = vadd.f32 %v357, %v468
      %v470 = vpop.f32.mrf.mxu0
      %471 = vmatprep.mubr.f32.mxu0 0.0
      %472 = vmatmul.mubr.f32.gmra.mxu0 %v376
      %v473 = vpop.f32.mrf.mxu0
      %v474 = vadd.f32 %v357, %v473
      %v475 = vpop.f32.mrf.mxu0
      %476 = vdwg.mxu0
      %v477 = vld [vmem:[%s3] sm:$0xff]
      %v478 = vld [vmem:[%s3 + $0x8] sm:$0xff]
      %v479 = vld [vmem:[%s3 + $0x10] sm:$0xff]
      %v480 = vld [vmem:[%s3 + $0x18] sm:$0xff]
      %v481 = vld [vmem:[%s4] sm:$0xff]
      %v482 = vld [vmem:[%s4 + $0x8] sm:$0xff]
      %v483 = vld [vmem:[%s4 + $0x10] sm:$0xff]
      %v484 = vld [vmem:[%s4 + $0x18] sm:$0xff]
      %v485 = vld [vmem:[%s5] sm:$0xff]
      %v486 = vld [vmem:[%s5 + $0x8] sm:$0xff]
      %v487 = vld [vmem:[%s5 + $0x10] sm:$0xff]
      %v488 = vld [vmem:[%s5 + $0x18] sm:$0xff]
      %v489 = vld [vmem:[%s6] sm:$0x1]
      %v490 = vld [vmem:[#allocation2] sm:$0xff]
      %v491 = vld [vmem:[#allocation3] sm:$0xff]
      %v492 = vld [vmem:[#allocation4] sm:$0xff]
      %v493 = vld [vmem:[#allocation5] sm:$0xff]
      %vm494 = vcmask 261120
      %v496 = vsel %vm494, %v490, 0
      %498 = vmatprep.subr.mxu0 0.0
      %499 = vmatpush1.msra.mxu0 0.0
      %500 = vmatprep.subr.mxu0 0.0
      %501 = vmatpush1.msra.mxu0 0.0
      %502 = vmatprep.subr.mxu0 0.0
      %503 = vmatpush1.msra.mxu0 0.0
      %504 = vmatprep.subr.mxu0 0.0
      %505 = vmatpush1.msra.mxu0 0.0
      %506 = vmatprep.subr.mxu0 0.0
      %507 = vmatpush1.msra.mxu0 0.0
      %508 = vmatprep.subr.mxu0 0.0
      %509 = vmatpush1.msra.mxu0 0.0
      %510 = vmatprep.subr.mxu0 0.0
      %511 = vmatpush1.msra.mxu0 0.0
      %512 = vmatprep.subr.mxu0 0.0
      %513 = vmatpush1.msra.mxu0 0.0
      %514 = vmatprep.subr.mxu0 0.0
      %515 = vmatpush1.msra.mxu0 0.0
      %516 = vmatprep.subr.mxu0 0.0
      %517 = vmatpush1.msra.mxu0 0.0
      %518 = vmatprep.subr.mxu0 0.0
      %519 = vmatpush1.msra.mxu0 0.0
      %520 = vmatprep.subr.mxu0 0.0
      %521 = vmatpush1.msra.mxu0 0.0
      %522 = vmatprep.subr.mxu0 0.0
      %523 = vmatpush1.msra.mxu0 %v480
      %524 = vmatprep.subr.mxu0 0.0
      %525 = vmatpush1.msra.mxu0 %v479
      %526 = vmatprep.subr.mxu0 0.0
      %527 = vmatpush1.msra.mxu0 %v478
      %528 = vmatprep.subr.mxu0 0.0
      %529 = vmatpush1.msra.mxu0 %v477
      %530 = vmatprep.subr.mxu0 0.0
      %531 = vmatpush2.msra.mxu0 0.0
      %532 = vmatprep.subr.mxu0 0.0
      %533 = vmatpush2.msra.mxu0 0.0
      %534 = vmatprep.subr.mxu0 0.0
      %535 = vmatpush2.msra.mxu0 0.0
      %536 = vmatprep.subr.mxu0 0.0
      %537 = vmatpush2.msra.mxu0 0.0
      %538 = vmatprep.subr.mxu0 0.0
      %539 = vmatpush2.msra.mxu0 0.0
      %540 = vmatprep.subr.mxu0 0.0
      %541 = vmatpush2.msra.mxu0 0.0
      %542 = vmatprep.subr.mxu0 0.0
      %543 = vmatpush2.msra.mxu0 0.0
      %544 = vmatprep.subr.mxu0 0.0
      %545 = vmatpush2.msra.mxu0 0.0
      %546 = vmatprep.subr.mxu0 0.0
      %547 = vmatpush2.msra.mxu0 0.0
      %548 = vmatprep.subr.mxu0 0.0
      %549 = vmatpush2.msra.mxu0 0.0
      %550 = vmatprep.subr.mxu0 0.0
      %551 = vmatpush2.msra.mxu0 0.0
      %552 = vmatprep.subr.mxu0 0.0
      %553 = vmatpush2.msra.mxu0 0.0
      %554 = vmatprep.subr.mxu0 0.0
      %555 = vmatpush2.msra.mxu0 0.0
      %556 = vmatprep.subr.mxu0 0.0
      %557 = vmatpush2.msra.mxu0 0.0
      %558 = vmatprep.subr.mxu0 0.0
      %559 = vmatpush2.msra.mxu0 0.0
      %560 = vmatprep.subr.mxu0 0.0
      %561 = vmatpush2.msra.mxu0 0.0
      %562 = vmatprep.mubr.f32.mxu0 0.0
      %563 = vmatmul.mubr.f32.gmra.mxu0 %v496
      %v564 = vpop.f32.mrf.mxu0
      %v565 = vadd.f32 0.0, %v564
      %v566 = vpop.f32.mrf.mxu0
      %567 = vdwg.mxu0
      %v568 = vadd.f32 %v449, %v565
      %v569 = vxor.u32 %v568, 2147483648
      %v570 = vmul.f32 %v569, 1.442695
      %v571 = vpow.pop %v570
      %v572 = vadd.f32 %v571, 1.0
      %v573 = vrcp.pop %v572
      %v574 = vmul.f32 1.0, %v573
      %v575 = vtanh.pop %v568
      %577 = vrot.lane.b32.xlu0 %v491, 32
      %v578 = vpop.permute.xlu0 %577
      %v580 = vmul.f32 %v574, %v578
      %582 = vrot.lane.b32.xlu0 %v575, 64
      %v583 = vpop.permute.xlu0 %582
      %v585 = vmul.f32 %v574, %v583
      %587 = vrot.lane.b32.xlu0 %v585, 32
      %v588 = vpop.permute.xlu0 %587
      %v590 = vadd.f32 %v580, %v588
      %v591 = vtanh.pop %v590
      %593 = vrot.lane.b32.xlu0 %v591, 64
      %v594 = vpop.permute.xlu0 %593
      %v596 = vmul.f32 %v574, %v594
      %v598 = vsel %vm494, %v492, 0
      %600 = vmatprep.subr.mxu0 0.0
      %601 = vmatpush1.msra.mxu0 0.0
      %602 = vmatprep.subr.mxu0 0.0
      %603 = vmatpush1.msra.mxu0 0.0
      %604 = vmatprep.subr.mxu0 0.0
      %605 = vmatpush1.msra.mxu0 0.0
      %606 = vmatprep.subr.mxu0 0.0
      %607 = vmatpush1.msra.mxu0 0.0
      %608 = vmatprep.subr.mxu0 0.0
      %609 = vmatpush1.msra.mxu0 0.0
      %610 = vmatprep.subr.mxu0 0.0
      %611 = vmatpush1.msra.mxu0 0.0
      %612 = vmatprep.subr.mxu0 0.0
      %613 = vmatpush1.msra.mxu0 0.0
      %614 = vmatprep.subr.mxu0 0.0
      %615 = vmatpush1.msra.mxu0 0.0
      %616 = vmatprep.subr.mxu0 0.0
      %617 = vmatpush1.msra.mxu0 0.0
      %618 = vmatprep.subr.mxu0 0.0
      %619 = vmatpush1.msra.mxu0 0.0
      %620 = vmatprep.subr.mxu0 0.0
      %621 = vmatpush1.msra.mxu0 0.0
      %622 = vmatprep.subr.mxu0 0.0
      %623 = vmatpush1.msra.mxu0 0.0
      %624 = vmatprep.subr.mxu0 0.0
      %625 = vmatpush1.msra.mxu0 %v488
      %626 = vmatprep.subr.mxu0 0.0
      %627 = vmatpush1.msra.mxu0 %v487
      %628 = vmatprep.subr.mxu0 0.0
      %629 = vmatpush1.msra.mxu0 %v486
      %630 = vmatprep.subr.mxu0 0.0
      %631 = vmatpush1.msra.mxu0 %v485
      %632 = vmatprep.subr.mxu0 0.0
      %633 = vmatpush2.msra.mxu0 0.0
      %634 = vmatprep.subr.mxu0 0.0
      %635 = vmatpush2.msra.mxu0 0.0
      %636 = vmatprep.subr.mxu0 0.0
      %637 = vmatpush2.msra.mxu0 0.0
      %638 = vmatprep.subr.mxu0 0.0
      %639 = vmatpush2.msra.mxu0 0.0
      %640 = vmatprep.subr.mxu0 0.0
      %641 = vmatpush2.msra.mxu0 0.0
      %642 = vmatprep.subr.mxu0 0.0
      %643 = vmatpush2.msra.mxu0 0.0
      %644 = vmatprep.subr.mxu0 0.0
      %645 = vmatpush2.msra.mxu0 0.0
      %646 = vmatprep.subr.mxu0 0.0
      %647 = vmatpush2.msra.mxu0 0.0
      %648 = vmatprep.subr.mxu0 0.0
      %649 = vmatpush2.msra.mxu0 0.0
      %650 = vmatprep.subr.mxu0 0.0
      %651 = vmatpush2.msra.mxu0 0.0
      %652 = vmatprep.subr.mxu0 0.0
      %653 = vmatpush2.msra.mxu0 0.0
      %654 = vmatprep.subr.mxu0 0.0
      %655 = vmatpush2.msra.mxu0 0.0
      %656 = vmatprep.subr.mxu0 0.0
      %657 = vmatpush2.msra.mxu0 0.0
      %658 = vmatprep.subr.mxu0 0.0
      %659 = vmatpush2.msra.mxu0 0.0
      %660 = vmatprep.subr.mxu0 0.0
      %661 = vmatpush2.msra.mxu0 0.0
      %662 = vmatprep.subr.mxu0 0.0
      %663 = vmatpush2.msra.mxu0 0.0
      %664 = vmatprep.mubr.f32.mxu0 0.0
      %665 = vmatmul.mubr.f32.gmra.mxu0 %v598
      %v666 = vpop.f32.mrf.mxu0
      %v667 = vadd.f32 0.0, %v666
      %v668 = vpop.f32.mrf.mxu0
      %669 = vdwg.mxu0
      %671 = vrot.lane.b32.xlu0 %v596, 32
      %v672 = vpop.permute.xlu0 %671
      %v673 = vsel %vm494, %v672, 0
      %675 = vmatprep.subr.mxu0 0.0
      %676 = vmatpush1.msra.mxu0 0.0
      %677 = vmatprep.subr.mxu0 0.0
      %678 = vmatpush1.msra.mxu0 0.0
      %679 = vmatprep.subr.mxu0 0.0
      %680 = vmatpush1.msra.mxu0 0.0
      %681 = vmatprep.subr.mxu0 0.0
      %682 = vmatpush1.msra.mxu0 0.0
      %683 = vmatprep.subr.mxu0 0.0
      %684 = vmatpush1.msra.mxu0 0.0
      %685 = vmatprep.subr.mxu0 0.0
      %686 = vmatpush1.msra.mxu0 0.0
      %687 = vmatprep.subr.mxu0 0.0
      %688 = vmatpush1.msra.mxu0 0.0
      %689 = vmatprep.subr.mxu0 0.0
      %690 = vmatpush1.msra.mxu0 0.0
      %691 = vmatprep.subr.mxu0 0.0
      %692 = vmatpush1.msra.mxu0 0.0
      %693 = vmatprep.subr.mxu0 0.0
      %694 = vmatpush1.msra.mxu0 0.0
      %695 = vmatprep.subr.mxu0 0.0
      %696 = vmatpush1.msra.mxu0 0.0
      %697 = vmatprep.subr.mxu0 0.0
      %698 = vmatpush1.msra.mxu0 0.0
      %699 = vmatprep.subr.mxu0 0.0
      %700 = vmatpush1.msra.mxu0 %v484
      %701 = vmatprep.subr.mxu0 0.0
      %702 = vmatpush1.msra.mxu0 %v483
      %703 = vmatprep.subr.mxu0 0.0
      %704 = vmatpush1.msra.mxu0 %v482
      %705 = vmatprep.subr.mxu0 0.0
      %706 = vmatpush1.msra.mxu0 %v481
      %707 = vmatprep.subr.mxu0 0.0
      %708 = vmatpush2.msra.mxu0 0.0
      %709 = vmatprep.subr.mxu0 0.0
      %710 = vmatpush2.msra.mxu0 0.0
      %711 = vmatprep.subr.mxu0 0.0
      %712 = vmatpush2.msra.mxu0 0.0
      %713 = vmatprep.subr.mxu0 0.0
      %714 = vmatpush2.msra.mxu0 0.0
      %715 = vmatprep.subr.mxu0 0.0
      %716 = vmatpush2.msra.mxu0 0.0
      %717 = vmatprep.subr.mxu0 0.0
      %718 = vmatpush2.msra.mxu0 0.0
      %719 = vmatprep.subr.mxu0 0.0
      %720 = vmatpush2.msra.mxu0 0.0
      %721 = vmatprep.subr.mxu0 0.0
      %722 = vmatpush2.msra.mxu0 0.0
      %723 = vmatprep.subr.mxu0 0.0
      %724 = vmatpush2.msra.mxu0 0.0
      %725 = vmatprep.subr.mxu0 0.0
      %726 = vmatpush2.msra.mxu0 0.0
      %727 = vmatprep.subr.mxu0 0.0
      %728 = vmatpush2.msra.mxu0 0.0
      %729 = vmatprep.subr.mxu0 0.0
      %730 = vmatpush2.msra.mxu0 0.0
      %731 = vmatprep.subr.mxu0 0.0
      %732 = vmatpush2.msra.mxu0 0.0
      %733 = vmatprep.subr.mxu0 0.0
      %734 = vmatpush2.msra.mxu0 0.0
      %735 = vmatprep.subr.mxu0 0.0
      %736 = vmatpush2.msra.mxu0 0.0
      %737 = vmatprep.subr.mxu0 0.0
      %738 = vmatpush2.msra.mxu0 0.0
      %739 = vmatprep.mubr.f32.mxu0 0.0
      %740 = vmatmul.mubr.f32.gmra.mxu0 %v673
      %v741 = vpop.f32.mrf.mxu0
      %v742 = vadd.f32 %v667, %v741
      %v743 = vpop.f32.mrf.mxu0
      %744 = vdwg.mxu0
      %v746 = vlaneseq
      %v747 = vshrl.u32 %v746, 7
      %v748 = vsub.s32 0, %v747
      %v749 = vrot.slane %v489, %v748
      %v751 = vadd.f32 %v742, %v749
      %v752 = vxor.u32 %v751, 2147483648
      %v753 = vmul.f32 %v752, 1.442695
      %v754 = vpow.pop %v753
      %v755 = vadd.f32 %v754, 1.0
      %v756 = vrcp.pop %v755
      %v757 = vmul.f32 1.0, %v756
      %v758 = vtanh.pop %v751
      %760 = vrot.lane.b32.xlu0 %v493, 32
      %v761 = vpop.permute.xlu0 %760
      %v763 = vmul.f32 %v757, %v761
      %765 = vrot.lane.b32.xlu0 %v758, 64
      %v766 = vpop.permute.xlu0 %765
      %v768 = vmul.f32 %v757, %v766
      %770 = vrot.lane.b32.xlu0 %v768, 32
      %v771 = vpop.permute.xlu0 %770
      %v773 = vadd.f32 %v763, %v771
      %v774 = vtanh.pop %v773
      %776 = vrot.lane.b32.xlu0 %v774, 64
      %v777 = vpop.permute.xlu0 %776
      %v779 = vmul.f32 %v757, %v777
      %781 = vrot.lane.b32.xlu0 %v779, 32
      %v782 = vpop.permute.xlu0 %781
      %784 = vst.msk [vmem:[#allocation6] sm:$0xff] %vm494, %v782
      %785 = vmatprep.subr.mxu0 0.0
      %786 = vmatpush1.msra.mxu0 0.0
      %787 = vmatprep.subr.mxu0 0.0
      %788 = vmatpush1.msra.mxu0 0.0
      %789 = vmatprep.subr.mxu0 0.0
      %790 = vmatpush1.msra.mxu0 0.0
      %791 = vmatprep.subr.mxu0 0.0
      %792 = vmatpush1.msra.mxu0 0.0
      %793 = vmatprep.subr.mxu0 0.0
      %794 = vmatpush1.msra.mxu0 0.0
      %795 = vmatprep.subr.mxu0 0.0
      %796 = vmatpush1.msra.mxu0 0.0
      %797 = vmatprep.subr.mxu0 0.0
      %798 = vmatpush1.msra.mxu0 0.0
      %799 = vmatprep.subr.mxu0 0.0
      %800 = vmatpush1.msra.mxu0 0.0
      %801 = vmatprep.subr.mxu0 0.0
      %802 = vmatpush1.msra.mxu0 0.0
      %803 = vmatprep.subr.mxu0 0.0
      %804 = vmatpush1.msra.mxu0 0.0
      %805 = vmatprep.subr.mxu0 0.0
      %806 = vmatpush1.msra.mxu0 0.0
      %807 = vmatprep.subr.mxu0 0.0
      %808 = vmatpush1.msra.mxu0 0.0
      %809 = vmatprep.subr.mxu0 0.0
      %810 = vmatpush1.msra.mxu0 %v480
      %811 = vmatprep.subr.mxu0 0.0
      %812 = vmatpush1.msra.mxu0 %v479
      %813 = vmatprep.subr.mxu0 0.0
      %814 = vmatpush1.msra.mxu0 %v478
      %815 = vmatprep.subr.mxu0 0.0
      %816 = vmatpush1.msra.mxu0 %v477
      %817 = vmatprep.subr.mxu0 0.0
      %818 = vmatpush2.msra.mxu0 0.0
      %819 = vmatprep.subr.mxu0 0.0
      %820 = vmatpush2.msra.mxu0 0.0
      %821 = vmatprep.subr.mxu0 0.0
      %822 = vmatpush2.msra.mxu0 0.0
      %823 = vmatprep.subr.mxu0 0.0
      %824 = vmatpush2.msra.mxu0 0.0
      %825 = vmatprep.subr.mxu0 0.0
      %826 = vmatpush2.msra.mxu0 0.0
      %827 = vmatprep.subr.mxu0 0.0
      %828 = vmatpush2.msra.mxu0 0.0
      %829 = vmatprep.subr.mxu0 0.0
      %830 = vmatpush2.msra.mxu0 0.0
      %831 = vmatprep.subr.mxu0 0.0
      %832 = vmatpush2.msra.mxu0 0.0
      %833 = vmatprep.subr.mxu0 0.0
      %834 = vmatpush2.msra.mxu0 0.0
      %835 = vmatprep.subr.mxu0 0.0
      %836 = vmatpush2.msra.mxu0 0.0
      %837 = vmatprep.subr.mxu0 0.0
      %838 = vmatpush2.msra.mxu0 0.0
      %839 = vmatprep.subr.mxu0 0.0
      %840 = vmatpush2.msra.mxu0 0.0
      %841 = vmatprep.subr.mxu0 0.0
      %842 = vmatpush2.msra.mxu0 0.0
      %843 = vmatprep.subr.mxu0 0.0
      %844 = vmatpush2.msra.mxu0 0.0
      %845 = vmatprep.subr.mxu0 0.0
      %846 = vmatpush2.msra.mxu0 0.0
      %847 = vmatprep.subr.mxu0 0.0
      %848 = vmatpush2.msra.mxu0 0.0
      %849 = vmatprep.mubr.f32.mxu0 0.0
      %850 = vmatmul.mubr.f32.gmra.mxu0 %v673
      %v851 = vpop.f32.mrf.mxu0
      %v852 = vadd.f32 0.0, %v851
      %v853 = vpop.f32.mrf.mxu0
      %854 = vdwg.mxu0
      %v855 = vadd.f32 %v454, %v852
      %v856 = vxor.u32 %v855, 2147483648
      %v857 = vmul.f32 %v856, 1.442695
      %v858 = vpow.pop %v857
      %v859 = vadd.f32 %v858, 1.0
      %v860 = vrcp.pop %v859
      %v861 = vmul.f32 1.0, %v860
      %v862 = vtanh.pop %v855
      %v863 = vmul.f32 %v861, %v590
      %865 = vrot.lane.b32.xlu0 %v862, 64
      %v866 = vpop.permute.xlu0 %865
      %v868 = vmul.f32 %v861, %v866
      %870 = vrot.lane.b32.xlu0 %v868, 32
      %v871 = vpop.permute.xlu0 %870
      %v873 = vadd.f32 %v863, %v871
      %v874 = vtanh.pop %v873
      %876 = vrot.lane.b32.xlu0 %v874, 64
      %v877 = vpop.permute.xlu0 %876
      %v879 = vmul.f32 %v861, %v877
      %v880 = vsel %vm494, %v782, 0
      %882 = vmatprep.subr.mxu0 0.0
      %883 = vmatpush1.msra.mxu0 0.0
      %884 = vmatprep.subr.mxu0 0.0
      %885 = vmatpush1.msra.mxu0 0.0
      %886 = vmatprep.subr.mxu0 0.0
      %887 = vmatpush1.msra.mxu0 0.0
      %888 = vmatprep.subr.mxu0 0.0
      %889 = vmatpush1.msra.mxu0 0.0
      %890 = vmatprep.subr.mxu0 0.0
      %891 = vmatpush1.msra.mxu0 0.0
      %892 = vmatprep.subr.mxu0 0.0
      %893 = vmatpush1.msra.mxu0 0.0
      %894 = vmatprep.subr.mxu0 0.0
      %895 = vmatpush1.msra.mxu0 0.0
      %896 = vmatprep.subr.mxu0 0.0
      %897 = vmatpush1.msra.mxu0 0.0
      %898 = vmatprep.subr.mxu0 0.0
      %899 = vmatpush1.msra.mxu0 0.0
      %900 = vmatprep.subr.mxu0 0.0
      %901 = vmatpush1.msra.mxu0 0.0
      %902 = vmatprep.subr.mxu0 0.0
      %903 = vmatpush1.msra.mxu0 0.0
      %904 = vmatprep.subr.mxu0 0.0
      %905 = vmatpush1.msra.mxu0 0.0
      %906 = vmatprep.subr.mxu0 0.0
      %907 = vmatpush1.msra.mxu0 %v488
      %908 = vmatprep.subr.mxu0 0.0
      %909 = vmatpush1.msra.mxu0 %v487
      %910 = vmatprep.subr.mxu0 0.0
      %911 = vmatpush1.msra.mxu0 %v486
      %912 = vmatprep.subr.mxu0 0.0
      %913 = vmatpush1.msra.mxu0 %v485
      %914 = vmatprep.subr.mxu0 0.0
      %915 = vmatpush2.msra.mxu0 0.0
      %916 = vmatprep.subr.mxu0 0.0
      %917 = vmatpush2.msra.mxu0 0.0
      %918 = vmatprep.subr.mxu0 0.0
      %919 = vmatpush2.msra.mxu0 0.0
      %920 = vmatprep.subr.mxu0 0.0
      %921 = vmatpush2.msra.mxu0 0.0
      %922 = vmatprep.subr.mxu0 0.0
      %923 = vmatpush2.msra.mxu0 0.0
      %924 = vmatprep.subr.mxu0 0.0
      %925 = vmatpush2.msra.mxu0 0.0
      %926 = vmatprep.subr.mxu0 0.0
      %927 = vmatpush2.msra.mxu0 0.0
      %928 = vmatprep.subr.mxu0 0.0
      %929 = vmatpush2.msra.mxu0 0.0
      %930 = vmatprep.subr.mxu0 0.0
      %931 = vmatpush2.msra.mxu0 0.0
      %932 = vmatprep.subr.mxu0 0.0
      %933 = vmatpush2.msra.mxu0 0.0
      %934 = vmatprep.subr.mxu0 0.0
      %935 = vmatpush2.msra.mxu0 0.0
      %936 = vmatprep.subr.mxu0 0.0
      %937 = vmatpush2.msra.mxu0 0.0
      %938 = vmatprep.subr.mxu0 0.0
      %939 = vmatpush2.msra.mxu0 0.0
      %940 = vmatprep.subr.mxu0 0.0
      %941 = vmatpush2.msra.mxu0 0.0
      %942 = vmatprep.subr.mxu0 0.0
      %943 = vmatpush2.msra.mxu0 0.0
      %944 = vmatprep.subr.mxu0 0.0
      %945 = vmatpush2.msra.mxu0 0.0
      %946 = vmatprep.mubr.f32.mxu0 0.0
      %947 = vmatmul.mubr.f32.gmra.mxu0 %v880
      %v948 = vpop.f32.mrf.mxu0
      %v949 = vadd.f32 0.0, %v948
      %v950 = vpop.f32.mrf.mxu0
      %951 = vdwg.mxu0
      %953 = vrot.lane.b32.xlu0 %v879, 32
      %v954 = vpop.permute.xlu0 %953
      %v955 = vsel %vm494, %v954, 0
      %957 = vmatprep.subr.mxu0 0.0
      %958 = vmatpush1.msra.mxu0 0.0
      %959 = vmatprep.subr.mxu0 0.0
      %960 = vmatpush1.msra.mxu0 0.0
      %961 = vmatprep.subr.mxu0 0.0
      %962 = vmatpush1.msra.mxu0 0.0
      %963 = vmatprep.subr.mxu0 0.0
      %964 = vmatpush1.msra.mxu0 0.0
      %965 = vmatprep.subr.mxu0 0.0
      %966 = vmatpush1.msra.mxu0 0.0
      %967 = vmatprep.subr.mxu0 0.0
      %968 = vmatpush1.msra.mxu0 0.0
      %969 = vmatprep.subr.mxu0 0.0
      %970 = vmatpush1.msra.mxu0 0.0
      %971 = vmatprep.subr.mxu0 0.0
      %972 = vmatpush1.msra.mxu0 0.0
      %973 = vmatprep.subr.mxu0 0.0
      %974 = vmatpush1.msra.mxu0 0.0
      %975 = vmatprep.subr.mxu0 0.0
      %976 = vmatpush1.msra.mxu0 0.0
      %977 = vmatprep.subr.mxu0 0.0
      %978 = vmatpush1.msra.mxu0 0.0
      %979 = vmatprep.subr.mxu0 0.0
      %980 = vmatpush1.msra.mxu0 0.0
      %981 = vmatprep.subr.mxu0 0.0
      %982 = vmatpush1.msra.mxu0 %v484
      %983 = vmatprep.subr.mxu0 0.0
      %984 = vmatpush1.msra.mxu0 %v483
      %985 = vmatprep.subr.mxu0 0.0
      %986 = vmatpush1.msra.mxu0 %v482
      %987 = vmatprep.subr.mxu0 0.0
      %988 = vmatpush1.msra.mxu0 %v481
      %989 = vmatprep.subr.mxu0 0.0
      %990 = vmatpush2.msra.mxu0 0.0
      %991 = vmatprep.subr.mxu0 0.0
      %992 = vmatpush2.msra.mxu0 0.0
      %993 = vmatprep.subr.mxu0 0.0
      %994 = vmatpush2.msra.mxu0 0.0
      %995 = vmatprep.subr.mxu0 0.0
      %996 = vmatpush2.msra.mxu0 0.0
      %997 = vmatprep.subr.mxu0 0.0
      %998 = vmatpush2.msra.mxu0 0.0
      %999 = vmatprep.subr.mxu0 0.0
      %1000 = vmatpush2.msra.mxu0 0.0
      %1001 = vmatprep.subr.mxu0 0.0
      %1002 = vmatpush2.msra.mxu0 0.0
      %1003 = vmatprep.subr.mxu0 0.0
      %1004 = vmatpush2.msra.mxu0 0.0
      %1005 = vmatprep.subr.mxu0 0.0
      %1006 = vmatpush2.msra.mxu0 0.0
      %1007 = vmatprep.subr.mxu0 0.0
      %1008 = vmatpush2.msra.mxu0 0.0
      %1009 = vmatprep.subr.mxu0 0.0
      %1010 = vmatpush2.msra.mxu0 0.0
      %1011 = vmatprep.subr.mxu0 0.0
      %1012 = vmatpush2.msra.mxu0 0.0
      %1013 = vmatprep.subr.mxu0 0.0
      %1014 = vmatpush2.msra.mxu0 0.0
      %1015 = vmatprep.subr.mxu0 0.0
      %1016 = vmatpush2.msra.mxu0 0.0
      %1017 = vmatprep.subr.mxu0 0.0
      %1018 = vmatpush2.msra.mxu0 0.0
      %1019 = vmatprep.subr.mxu0 0.0
      %1020 = vmatpush2.msra.mxu0 0.0
      %1021 = vmatprep.mubr.f32.mxu0 0.0
      %1022 = vmatmul.mubr.f32.gmra.mxu0 %v955
      %v1023 = vpop.f32.mrf.mxu0
      %v1024 = vadd.f32 %v949, %v1023
      %v1025 = vpop.f32.mrf.mxu0
      %1026 = vdwg.mxu0
      %v1027 = vadd.f32 %v1024, %v749
      %v1028 = vxor.u32 %v1027, 2147483648
      %v1029 = vmul.f32 %v1028, 1.442695
      %v1030 = vpow.pop %v1029
      %v1031 = vadd.f32 %v1030, 1.0
      %v1032 = vrcp.pop %v1031
      %v1033 = vmul.f32 1.0, %v1032
      %v1034 = vtanh.pop %v1027
      %v1035 = vmul.f32 %v1033, %v773
      %1037 = vrot.lane.b32.xlu0 %v1034, 64
      %v1038 = vpop.permute.xlu0 %1037
      %v1040 = vmul.f32 %v1033, %v1038
      %1042 = vrot.lane.b32.xlu0 %v1040, 32
      %v1043 = vpop.permute.xlu0 %1042
      %v1045 = vadd.f32 %v1035, %v1043
      %v1046 = vtanh.pop %v1045
      %1048 = vrot.lane.b32.xlu0 %v1046, 64
      %v1049 = vpop.permute.xlu0 %1048
      %v1051 = vmul.f32 %v1033, %v1049
      %1053 = vrot.lane.b32.xlu0 %v1051, 32
      %v1054 = vpop.permute.xlu0 %1053
      %1056 = vst.msk [vmem:[#allocation6 + $0x8] sm:$0xff] %vm494, %v1054
      %1057 = vmatprep.subr.mxu0 0.0
      %1058 = vmatpush1.msra.mxu0 0.0
      %1059 = vmatprep.subr.mxu0 0.0
      %1060 = vmatpush1.msra.mxu0 0.0
      %1061 = vmatprep.subr.mxu0 0.0
      %1062 = vmatpush1.msra.mxu0 0.0
      %1063 = vmatprep.subr.mxu0 0.0
      %1064 = vmatpush1.msra.mxu0 0.0
      %1065 = vmatprep.subr.mxu0 0.0
      %1066 = vmatpush1.msra.mxu0 0.0
      %1067 = vmatprep.subr.mxu0 0.0
      %1068 = vmatpush1.msra.mxu0 0.0
      %1069 = vmatprep.subr.mxu0 0.0
      %1070 = vmatpush1.msra.mxu0 0.0
      %1071 = vmatprep.subr.mxu0 0.0
      %1072 = vmatpush1.msra.mxu0 0.0
      %1073 = vmatprep.subr.mxu0 0.0
      %1074 = vmatpush1.msra.mxu0 0.0
      %1075 = vmatprep.subr.mxu0 0.0
      %1076 = vmatpush1.msra.mxu0 0.0
      %1077 = vmatprep.subr.mxu0 0.0
      %1078 = vmatpush1.msra.mxu0 0.0
      %1079 = vmatprep.subr.mxu0 0.0
      %1080 = vmatpush1.msra.mxu0 0.0
      %1081 = vmatprep.subr.mxu0 0.0
      %1082 = vmatpush1.msra.mxu0 %v480
      %1083 = vmatprep.subr.mxu0 0.0
      %1084 = vmatpush1.msra.mxu0 %v479
      %1085 = vmatprep.subr.mxu0 0.0
      %1086 = vmatpush1.msra.mxu0 %v478
      %1087 = vmatprep.subr.mxu0 0.0
      %1088 = vmatpush1.msra.mxu0 %v477
      %1089 = vmatprep.subr.mxu0 0.0
      %1090 = vmatpush2.msra.mxu0 0.0
      %1091 = vmatprep.subr.mxu0 0.0
      %1092 = vmatpush2.msra.mxu0 0.0
      %1093 = vmatprep.subr.mxu0 0.0
      %1094 = vmatpush2.msra.mxu0 0.0
      %1095 = vmatprep.subr.mxu0 0.0
      %1096 = vmatpush2.msra.mxu0 0.0
      %1097 = vmatprep.subr.mxu0 0.0
      %1098 = vmatpush2.msra.mxu0 0.0
      %1099 = vmatprep.subr.mxu0 0.0
      %1100 = vmatpush2.msra.mxu0 0.0
      %1101 = vmatprep.subr.mxu0 0.0
      %1102 = vmatpush2.msra.mxu0 0.0
      %1103 = vmatprep.subr.mxu0 0.0
      %1104 = vmatpush2.msra.mxu0 0.0
      %1105 = vmatprep.subr.mxu0 0.0
      %1106 = vmatpush2.msra.mxu0 0.0
      %1107 = vmatprep.subr.mxu0 0.0
      %1108 = vmatpush2.msra.mxu0 0.0
      %1109 = vmatprep.subr.mxu0 0.0
      %1110 = vmatpush2.msra.mxu0 0.0
      %1111 = vmatprep.subr.mxu0 0.0
      %1112 = vmatpush2.msra.mxu0 0.0
      %1113 = vmatprep.subr.mxu0 0.0
      %1114 = vmatpush2.msra.mxu0 0.0
      %1115 = vmatprep.subr.mxu0 0.0
      %1116 = vmatpush2.msra.mxu0 0.0
      %1117 = vmatprep.subr.mxu0 0.0
      %1118 = vmatpush2.msra.mxu0 0.0
      %1119 = vmatprep.subr.mxu0 0.0
      %1120 = vmatpush2.msra.mxu0 0.0
      %1121 = vmatprep.mubr.f32.mxu0 0.0
      %1122 = vmatmul.mubr.f32.gmra.mxu0 %v955
      %v1123 = vpop.f32.mrf.mxu0
      %v1124 = vadd.f32 0.0, %v1123
      %v1125 = vpop.f32.mrf.mxu0
      %1126 = vdwg.mxu0
      %v1127 = vadd.f32 %v459, %v1124
      %v1128 = vxor.u32 %v1127, 2147483648
      %v1129 = vmul.f32 %v1128, 1.442695
      %v1130 = vpow.pop %v1129
      %v1131 = vadd.f32 %v1130, 1.0
      %v1132 = vrcp.pop %v1131
      %v1133 = vmul.f32 1.0, %v1132
      %v1134 = vtanh.pop %v1127
      %v1135 = vmul.f32 %v1133, %v873
      %1137 = vrot.lane.b32.xlu0 %v1134, 64
      %v1138 = vpop.permute.xlu0 %1137
      %v1140 = vmul.f32 %v1133, %v1138
      %1142 = vrot.lane.b32.xlu0 %v1140, 32
      %v1143 = vpop.permute.xlu0 %1142
      %v1145 = vadd.f32 %v1135, %v1143
      %v1146 = vtanh.pop %v1145
      %1148 = vrot.lane.b32.xlu0 %v1146, 64
      %v1149 = vpop.permute.xlu0 %1148
      %v1151 = vmul.f32 %v1133, %v1149
      %v1152 = vsel %vm494, %v1054, 0
      %1154 = vmatprep.subr.mxu0 0.0
      %1155 = vmatpush1.msra.mxu0 0.0
      %1156 = vmatprep.subr.mxu0 0.0
      %1157 = vmatpush1.msra.mxu0 0.0
      %1158 = vmatprep.subr.mxu0 0.0
      %1159 = vmatpush1.msra.mxu0 0.0
      %1160 = vmatprep.subr.mxu0 0.0
      %1161 = vmatpush1.msra.mxu0 0.0
      %1162 = vmatprep.subr.mxu0 0.0
      %1163 = vmatpush1.msra.mxu0 0.0
      %1164 = vmatprep.subr.mxu0 0.0
      %1165 = vmatpush1.msra.mxu0 0.0
      %1166 = vmatprep.subr.mxu0 0.0
      %1167 = vmatpush1.msra.mxu0 0.0
      %1168 = vmatprep.subr.mxu0 0.0
      %1169 = vmatpush1.msra.mxu0 0.0
      %1170 = vmatprep.subr.mxu0 0.0
      %1171 = vmatpush1.msra.mxu0 0.0
      %1172 = vmatprep.subr.mxu0 0.0
      %1173 = vmatpush1.msra.mxu0 0.0
      %1174 = vmatprep.subr.mxu0 0.0
      %1175 = vmatpush1.msra.mxu0 0.0
      %1176 = vmatprep.subr.mxu0 0.0
      %1177 = vmatpush1.msra.mxu0 0.0
      %1178 = vmatprep.subr.mxu0 0.0
      %1179 = vmatpush1.msra.mxu0 %v488
      %1180 = vmatprep.subr.mxu0 0.0
      %1181 = vmatpush1.msra.mxu0 %v487
      %1182 = vmatprep.subr.mxu0 0.0
      %1183 = vmatpush1.msra.mxu0 %v486
      %1184 = vmatprep.subr.mxu0 0.0
      %1185 = vmatpush1.msra.mxu0 %v485
      %1186 = vmatprep.subr.mxu0 0.0
      %1187 = vmatpush2.msra.mxu0 0.0
      %1188 = vmatprep.subr.mxu0 0.0
      %1189 = vmatpush2.msra.mxu0 0.0
      %1190 = vmatprep.subr.mxu0 0.0
      %1191 = vmatpush2.msra.mxu0 0.0
      %1192 = vmatprep.subr.mxu0 0.0
      %1193 = vmatpush2.msra.mxu0 0.0
      %1194 = vmatprep.subr.mxu0 0.0
      %1195 = vmatpush2.msra.mxu0 0.0
      %1196 = vmatprep.subr.mxu0 0.0
      %1197 = vmatpush2.msra.mxu0 0.0
      %1198 = vmatprep.subr.mxu0 0.0
      %1199 = vmatpush2.msra.mxu0 0.0
      %1200 = vmatprep.subr.mxu0 0.0
      %1201 = vmatpush2.msra.mxu0 0.0
      %1202 = vmatprep.subr.mxu0 0.0
      %1203 = vmatpush2.msra.mxu0 0.0
      %1204 = vmatprep.subr.mxu0 0.0
      %1205 = vmatpush2.msra.mxu0 0.0
      %1206 = vmatprep.subr.mxu0 0.0
      %1207 = vmatpush2.msra.mxu0 0.0
      %1208 = vmatprep.subr.mxu0 0.0
      %1209 = vmatpush2.msra.mxu0 0.0
      %1210 = vmatprep.subr.mxu0 0.0
      %1211 = vmatpush2.msra.mxu0 0.0
      %1212 = vmatprep.subr.mxu0 0.0
      %1213 = vmatpush2.msra.mxu0 0.0
      %1214 = vmatprep.subr.mxu0 0.0
      %1215 = vmatpush2.msra.mxu0 0.0
      %1216 = vmatprep.subr.mxu0 0.0
      %1217 = vmatpush2.msra.mxu0 0.0
      %1218 = vmatprep.mubr.f32.mxu0 0.0
      %1219 = vmatmul.mubr.f32.gmra.mxu0 %v1152
      %v1220 = vpop.f32.mrf.mxu0
      %v1221 = vadd.f32 0.0, %v1220
      %v1222 = vpop.f32.mrf.mxu0
      %1223 = vdwg.mxu0
      %1225 = vrot.lane.b32.xlu0 %v1151, 32
      %v1226 = vpop.permute.xlu0 %1225
      %v1227 = vsel %vm494, %v1226, 0
      %1229 = vmatprep.subr.mxu0 0.0
      %1230 = vmatpush1.msra.mxu0 0.0
      %1231 = vmatprep.subr.mxu0 0.0
      %1232 = vmatpush1.msra.mxu0 0.0
      %1233 = vmatprep.subr.mxu0 0.0
      %1234 = vmatpush1.msra.mxu0 0.0
      %1235 = vmatprep.subr.mxu0 0.0
      %1236 = vmatpush1.msra.mxu0 0.0
      %1237 = vmatprep.subr.mxu0 0.0
      %1238 = vmatpush1.msra.mxu0 0.0
      %1239 = vmatprep.subr.mxu0 0.0
      %1240 = vmatpush1.msra.mxu0 0.0
      %1241 = vmatprep.subr.mxu0 0.0
      %1242 = vmatpush1.msra.mxu0 0.0
      %1243 = vmatprep.subr.mxu0 0.0
      %1244 = vmatpush1.msra.mxu0 0.0
      %1245 = vmatprep.subr.mxu0 0.0
      %1246 = vmatpush1.msra.mxu0 0.0
      %1247 = vmatprep.subr.mxu0 0.0
      %1248 = vmatpush1.msra.mxu0 0.0
      %1249 = vmatprep.subr.mxu0 0.0
      %1250 = vmatpush1.msra.mxu0 0.0
      %1251 = vmatprep.subr.mxu0 0.0
      %1252 = vmatpush1.msra.mxu0 0.0
      %1253 = vmatprep.subr.mxu0 0.0
      %1254 = vmatpush1.msra.mxu0 %v484
      %1255 = vmatprep.subr.mxu0 0.0
      %1256 = vmatpush1.msra.mxu0 %v483
      %1257 = vmatprep.subr.mxu0 0.0
      %1258 = vmatpush1.msra.mxu0 %v482
      %1259 = vmatprep.subr.mxu0 0.0
      %1260 = vmatpush1.msra.mxu0 %v481
      %1261 = vmatprep.subr.mxu0 0.0
      %1262 = vmatpush2.msra.mxu0 0.0
      %1263 = vmatprep.subr.mxu0 0.0
      %1264 = vmatpush2.msra.mxu0 0.0
      %1265 = vmatprep.subr.mxu0 0.0
      %1266 = vmatpush2.msra.mxu0 0.0
      %1267 = vmatprep.subr.mxu0 0.0
      %1268 = vmatpush2.msra.mxu0 0.0
      %1269 = vmatprep.subr.mxu0 0.0
      %1270 = vmatpush2.msra.mxu0 0.0
      %1271 = vmatprep.subr.mxu0 0.0
      %1272 = vmatpush2.msra.mxu0 0.0
      %1273 = vmatprep.subr.mxu0 0.0
      %1274 = vmatpush2.msra.mxu0 0.0
      %1275 = vmatprep.subr.mxu0 0.0
      %1276 = vmatpush2.msra.mxu0 0.0
      %1277 = vmatprep.subr.mxu0 0.0
      %1278 = vmatpush2.msra.mxu0 0.0
      %1279 = vmatprep.subr.mxu0 0.0
      %1280 = vmatpush2.msra.mxu0 0.0
      %1281 = vmatprep.subr.mxu0 0.0
      %1282 = vmatpush2.msra.mxu0 0.0
      %1283 = vmatprep.subr.mxu0 0.0
      %1284 = vmatpush2.msra.mxu0 0.0
      %1285 = vmatprep.subr.mxu0 0.0
      %1286 = vmatpush2.msra.mxu0 0.0
      %1287 = vmatprep.subr.mxu0 0.0
      %1288 = vmatpush2.msra.mxu0 0.0
      %1289 = vmatprep.subr.mxu0 0.0
      %1290 = vmatpush2.msra.mxu0 0.0
      %1291 = vmatprep.subr.mxu0 0.0
      %1292 = vmatpush2.msra.mxu0 0.0
      %1293 = vmatprep.mubr.f32.mxu0 0.0
      %1294 = vmatmul.mubr.f32.gmra.mxu0 %v1227
      %v1295 = vpop.f32.mrf.mxu0
      %v1296 = vadd.f32 %v1221, %v1295
      %v1297 = vpop.f32.mrf.mxu0
      %1298 = vdwg.mxu0
      %v1299 = vadd.f32 %v1296, %v749
      %v1300 = vxor.u32 %v1299, 2147483648
      %v1301 = vmul.f32 %v1300, 1.442695
      %v1302 = vpow.pop %v1301
      %v1303 = vadd.f32 %v1302, 1.0
      %v1304 = vrcp.pop %v1303
      %v1305 = vmul.f32 1.0, %v1304
      %v1306 = vtanh.pop %v1299
      %v1307 = vmul.f32 %v1305, %v1045
      %1309 = vrot.lane.b32.xlu0 %v1306, 64
      %v1310 = vpop.permute.xlu0 %1309
      %v1312 = vmul.f32 %v1305, %v1310
      %1314 = vrot.lane.b32.xlu0 %v1312, 32
      %v1315 = vpop.permute.xlu0 %1314
      %v1317 = vadd.f32 %v1307, %v1315
      %v1318 = vtanh.pop %v1317
      %1320 = vrot.lane.b32.xlu0 %v1318, 64
      %v1321 = vpop.permute.xlu0 %1320
      %v1323 = vmul.f32 %v1305, %v1321
      %1325 = vrot.lane.b32.xlu0 %v1323, 32
      %v1326 = vpop.permute.xlu0 %1325
      %1328 = vst.msk [vmem:[#allocation6 + $0x10] sm:$0xff] %vm494, %v1326
      %1329 = vmatprep.subr.mxu0 0.0
      %1330 = vmatpush1.msra.mxu0 0.0
      %1331 = vmatprep.subr.mxu0 0.0
      %1332 = vmatpush1.msra.mxu0 0.0
      %1333 = vmatprep.subr.mxu0 0.0
      %1334 = vmatpush1.msra.mxu0 0.0
      %1335 = vmatprep.subr.mxu0 0.0
      %1336 = vmatpush1.msra.mxu0 0.0
      %1337 = vmatprep.subr.mxu0 0.0
      %1338 = vmatpush1.msra.mxu0 0.0
      %1339 = vmatprep.subr.mxu0 0.0
      %1340 = vmatpush1.msra.mxu0 0.0
      %1341 = vmatprep.subr.mxu0 0.0
      %1342 = vmatpush1.msra.mxu0 0.0
      %1343 = vmatprep.subr.mxu0 0.0
      %1344 = vmatpush1.msra.mxu0 0.0
      %1345 = vmatprep.subr.mxu0 0.0
      %1346 = vmatpush1.msra.mxu0 0.0
      %1347 = vmatprep.subr.mxu0 0.0
      %1348 = vmatpush1.msra.mxu0 0.0
      %1349 = vmatprep.subr.mxu0 0.0
      %1350 = vmatpush1.msra.mxu0 0.0
      %1351 = vmatprep.subr.mxu0 0.0
      %1352 = vmatpush1.msra.mxu0 0.0
      %1353 = vmatprep.subr.mxu0 0.0
      %1354 = vmatpush1.msra.mxu0 %v480
      %1355 = vmatprep.subr.mxu0 0.0
      %1356 = vmatpush1.msra.mxu0 %v479
      %1357 = vmatprep.subr.mxu0 0.0
      %1358 = vmatpush1.msra.mxu0 %v478
      %1359 = vmatprep.subr.mxu0 0.0
      %1360 = vmatpush1.msra.mxu0 %v477
      %1361 = vmatprep.subr.mxu0 0.0
      %1362 = vmatpush2.msra.mxu0 0.0
      %1363 = vmatprep.subr.mxu0 0.0
      %1364 = vmatpush2.msra.mxu0 0.0
      %1365 = vmatprep.subr.mxu0 0.0
      %1366 = vmatpush2.msra.mxu0 0.0
      %1367 = vmatprep.subr.mxu0 0.0
      %1368 = vmatpush2.msra.mxu0 0.0
      %1369 = vmatprep.subr.mxu0 0.0
      %1370 = vmatpush2.msra.mxu0 0.0
      %1371 = vmatprep.subr.mxu0 0.0
      %1372 = vmatpush2.msra.mxu0 0.0
      %1373 = vmatprep.subr.mxu0 0.0
      %1374 = vmatpush2.msra.mxu0 0.0
      %1375 = vmatprep.subr.mxu0 0.0
      %1376 = vmatpush2.msra.mxu0 0.0
      %1377 = vmatprep.subr.mxu0 0.0
      %1378 = vmatpush2.msra.mxu0 0.0
      %1379 = vmatprep.subr.mxu0 0.0
      %1380 = vmatpush2.msra.mxu0 0.0
      %1381 = vmatprep.subr.mxu0 0.0
      %1382 = vmatpush2.msra.mxu0 0.0
      %1383 = vmatprep.subr.mxu0 0.0
      %1384 = vmatpush2.msra.mxu0 0.0
      %1385 = vmatprep.subr.mxu0 0.0
      %1386 = vmatpush2.msra.mxu0 0.0
      %1387 = vmatprep.subr.mxu0 0.0
      %1388 = vmatpush2.msra.mxu0 0.0
      %1389 = vmatprep.subr.mxu0 0.0
      %1390 = vmatpush2.msra.mxu0 0.0
      %1391 = vmatprep.subr.mxu0 0.0
      %1392 = vmatpush2.msra.mxu0 0.0
      %1393 = vmatprep.mubr.f32.mxu0 0.0
      %1394 = vmatmul.mubr.f32.gmra.mxu0 %v1227
      %v1395 = vpop.f32.mrf.mxu0
      %v1396 = vadd.f32 0.0, %v1395
      %v1397 = vpop.f32.mrf.mxu0
      %1398 = vdwg.mxu0
      %v1399 = vadd.f32 %v464, %v1396
      %v1400 = vxor.u32 %v1399, 2147483648
      %v1401 = vmul.f32 %v1400, 1.442695
      %v1402 = vpow.pop %v1401
      %v1403 = vadd.f32 %v1402, 1.0
      %v1404 = vrcp.pop %v1403
      %v1405 = vmul.f32 1.0, %v1404
      %v1406 = vtanh.pop %v1399
      %v1407 = vmul.f32 %v1405, %v1145
      %1409 = vrot.lane.b32.xlu0 %v1406, 64
      %v1410 = vpop.permute.xlu0 %1409
      %v1412 = vmul.f32 %v1405, %v1410
      %1414 = vrot.lane.b32.xlu0 %v1412, 32
      %v1415 = vpop.permute.xlu0 %1414
      %v1417 = vadd.f32 %v1407, %v1415
      %v1418 = vtanh.pop %v1417
      %1420 = vrot.lane.b32.xlu0 %v1418, 64
      %v1421 = vpop.permute.xlu0 %1420
      %v1423 = vmul.f32 %v1405, %v1421
      %v1424 = vsel %vm494, %v1326, 0
      %1426 = vmatprep.subr.mxu0 0.0
      %1427 = vmatpush1.msra.mxu0 0.0
      %1428 = vmatprep.subr.mxu0 0.0
      %1429 = vmatpush1.msra.mxu0 0.0
      %1430 = vmatprep.subr.mxu0 0.0
      %1431 = vmatpush1.msra.mxu0 0.0
      %1432 = vmatprep.subr.mxu0 0.0
      %1433 = vmatpush1.msra.mxu0 0.0
      %1434 = vmatprep.subr.mxu0 0.0
      %1435 = vmatpush1.msra.mxu0 0.0
      %1436 = vmatprep.subr.mxu0 0.0
      %1437 = vmatpush1.msra.mxu0 0.0
      %1438 = vmatprep.subr.mxu0 0.0
      %1439 = vmatpush1.msra.mxu0 0.0
      %1440 = vmatprep.subr.mxu0 0.0
      %1441 = vmatpush1.msra.mxu0 0.0
      %1442 = vmatprep.subr.mxu0 0.0
      %1443 = vmatpush1.msra.mxu0 0.0
      %1444 = vmatprep.subr.mxu0 0.0
      %1445 = vmatpush1.msra.mxu0 0.0
      %1446 = vmatprep.subr.mxu0 0.0
      %1447 = vmatpush1.msra.mxu0 0.0
      %1448 = vmatprep.subr.mxu0 0.0
      %1449 = vmatpush1.msra.mxu0 0.0
      %1450 = vmatprep.subr.mxu0 0.0
      %1451 = vmatpush1.msra.mxu0 %v488
      %1452 = vmatprep.subr.mxu0 0.0
      %1453 = vmatpush1.msra.mxu0 %v487
      %1454 = vmatprep.subr.mxu0 0.0
      %1455 = vmatpush1.msra.mxu0 %v486
      %1456 = vmatprep.subr.mxu0 0.0
      %1457 = vmatpush1.msra.mxu0 %v485
      %1458 = vmatprep.subr.mxu0 0.0
      %1459 = vmatpush2.msra.mxu0 0.0
      %1460 = vmatprep.subr.mxu0 0.0
      %1461 = vmatpush2.msra.mxu0 0.0
      %1462 = vmatprep.subr.mxu0 0.0
      %1463 = vmatpush2.msra.mxu0 0.0
      %1464 = vmatprep.subr.mxu0 0.0
      %1465 = vmatpush2.msra.mxu0 0.0
      %1466 = vmatprep.subr.mxu0 0.0
      %1467 = vmatpush2.msra.mxu0 0.0
      %1468 = vmatprep.subr.mxu0 0.0
      %1469 = vmatpush2.msra.mxu0 0.0
      %1470 = vmatprep.subr.mxu0 0.0
      %1471 = vmatpush2.msra.mxu0 0.0
      %1472 = vmatprep.subr.mxu0 0.0
      %1473 = vmatpush2.msra.mxu0 0.0
      %1474 = vmatprep.subr.mxu0 0.0
      %1475 = vmatpush2.msra.mxu0 0.0
      %1476 = vmatprep.subr.mxu0 0.0
      %1477 = vmatpush2.msra.mxu0 0.0
      %1478 = vmatprep.subr.mxu0 0.0
      %1479 = vmatpush2.msra.mxu0 0.0
      %1480 = vmatprep.subr.mxu0 0.0
      %1481 = vmatpush2.msra.mxu0 0.0
      %1482 = vmatprep.subr.mxu0 0.0
      %1483 = vmatpush2.msra.mxu0 0.0
      %1484 = vmatprep.subr.mxu0 0.0
      %1485 = vmatpush2.msra.mxu0 0.0
      %1486 = vmatprep.subr.mxu0 0.0
      %1487 = vmatpush2.msra.mxu0 0.0
      %1488 = vmatprep.subr.mxu0 0.0
      %1489 = vmatpush2.msra.mxu0 0.0
      %1490 = vmatprep.mubr.f32.mxu0 0.0
      %1491 = vmatmul.mubr.f32.gmra.mxu0 %v1424
      %v1492 = vpop.f32.mrf.mxu0
      %v1493 = vadd.f32 0.0, %v1492
      %v1494 = vpop.f32.mrf.mxu0
      %1495 = vdwg.mxu0
      %1497 = vrot.lane.b32.xlu0 %v1423, 32
      %v1498 = vpop.permute.xlu0 %1497
      %v1499 = vsel %vm494, %v1498, 0
      %1501 = vmatprep.subr.mxu0 0.0
      %1502 = vmatpush1.msra.mxu0 0.0
      %1503 = vmatprep.subr.mxu0 0.0
      %1504 = vmatpush1.msra.mxu0 0.0
      %1505 = vmatprep.subr.mxu0 0.0
      %1506 = vmatpush1.msra.mxu0 0.0
      %1507 = vmatprep.subr.mxu0 0.0
      %1508 = vmatpush1.msra.mxu0 0.0
      %1509 = vmatprep.subr.mxu0 0.0
      %1510 = vmatpush1.msra.mxu0 0.0
      %1511 = vmatprep.subr.mxu0 0.0
      %1512 = vmatpush1.msra.mxu0 0.0
      %1513 = vmatprep.subr.mxu0 0.0
      %1514 = vmatpush1.msra.mxu0 0.0
      %1515 = vmatprep.subr.mxu0 0.0
      %1516 = vmatpush1.msra.mxu0 0.0
      %1517 = vmatprep.subr.mxu0 0.0
      %1518 = vmatpush1.msra.mxu0 0.0
      %1519 = vmatprep.subr.mxu0 0.0
      %1520 = vmatpush1.msra.mxu0 0.0
      %1521 = vmatprep.subr.mxu0 0.0
      %1522 = vmatpush1.msra.mxu0 0.0
      %1523 = vmatprep.subr.mxu0 0.0
      %1524 = vmatpush1.msra.mxu0 0.0
      %1525 = vmatprep.subr.mxu0 0.0
      %1526 = vmatpush1.msra.mxu0 %v484
      %1527 = vmatprep.subr.mxu0 0.0
      %1528 = vmatpush1.msra.mxu0 %v483
      %1529 = vmatprep.subr.mxu0 0.0
      %1530 = vmatpush1.msra.mxu0 %v482
      %1531 = vmatprep.subr.mxu0 0.0
      %1532 = vmatpush1.msra.mxu0 %v481
      %1533 = vmatprep.subr.mxu0 0.0
      %1534 = vmatpush2.msra.mxu0 0.0
      %1535 = vmatprep.subr.mxu0 0.0
      %1536 = vmatpush2.msra.mxu0 0.0
      %1537 = vmatprep.subr.mxu0 0.0
      %1538 = vmatpush2.msra.mxu0 0.0
      %1539 = vmatprep.subr.mxu0 0.0
      %1540 = vmatpush2.msra.mxu0 0.0
      %1541 = vmatprep.subr.mxu0 0.0
      %1542 = vmatpush2.msra.mxu0 0.0
      %1543 = vmatprep.subr.mxu0 0.0
      %1544 = vmatpush2.msra.mxu0 0.0
      %1545 = vmatprep.subr.mxu0 0.0
      %1546 = vmatpush2.msra.mxu0 0.0
      %1547 = vmatprep.subr.mxu0 0.0
      %1548 = vmatpush2.msra.mxu0 0.0
      %1549 = vmatprep.subr.mxu0 0.0
      %1550 = vmatpush2.msra.mxu0 0.0
      %1551 = vmatprep.subr.mxu0 0.0
      %1552 = vmatpush2.msra.mxu0 0.0
      %1553 = vmatprep.subr.mxu0 0.0
      %1554 = vmatpush2.msra.mxu0 0.0
      %1555 = vmatprep.subr.mxu0 0.0
      %1556 = vmatpush2.msra.mxu0 0.0
      %1557 = vmatprep.subr.mxu0 0.0
      %1558 = vmatpush2.msra.mxu0 0.0
      %1559 = vmatprep.subr.mxu0 0.0
      %1560 = vmatpush2.msra.mxu0 0.0
      %1561 = vmatprep.subr.mxu0 0.0
      %1562 = vmatpush2.msra.mxu0 0.0
      %1563 = vmatprep.subr.mxu0 0.0
      %1564 = vmatpush2.msra.mxu0 0.0
      %1565 = vmatprep.mubr.f32.mxu0 0.0
      %1566 = vmatmul.mubr.f32.gmra.mxu0 %v1499
      %v1567 = vpop.f32.mrf.mxu0
      %v1568 = vadd.f32 %v1493, %v1567
      %v1569 = vpop.f32.mrf.mxu0
      %1570 = vdwg.mxu0
      %v1571 = vadd.f32 %v1568, %v749
      %v1572 = vxor.u32 %v1571, 2147483648
      %v1573 = vmul.f32 %v1572, 1.442695
      %v1574 = vpow.pop %v1573
      %v1575 = vadd.f32 %v1574, 1.0
      %v1576 = vrcp.pop %v1575
      %v1577 = vmul.f32 1.0, %v1576
      %v1578 = vtanh.pop %v1571
      %v1579 = vmul.f32 %v1577, %v1317
      %1581 = vrot.lane.b32.xlu0 %v1578, 64
      %v1582 = vpop.permute.xlu0 %1581
      %v1584 = vmul.f32 %v1577, %v1582
      %1586 = vrot.lane.b32.xlu0 %v1584, 32
      %v1587 = vpop.permute.xlu0 %1586
      %v1589 = vadd.f32 %v1579, %v1587
      %v1590 = vtanh.pop %v1589
      %1592 = vrot.lane.b32.xlu0 %v1590, 64
      %v1593 = vpop.permute.xlu0 %1592
      %v1595 = vmul.f32 %v1577, %v1593
      %1597 = vrot.lane.b32.xlu0 %v1595, 32
      %v1598 = vpop.permute.xlu0 %1597
      %1600 = vst.msk [vmem:[#allocation6 + $0x18] sm:$0xff] %vm494, %v1598
      %1601 = vmatprep.subr.mxu0 0.0
      %1602 = vmatpush1.msra.mxu0 0.0
      %1603 = vmatprep.subr.mxu0 0.0
      %1604 = vmatpush1.msra.mxu0 0.0
      %1605 = vmatprep.subr.mxu0 0.0
      %1606 = vmatpush1.msra.mxu0 0.0
      %1607 = vmatprep.subr.mxu0 0.0
      %1608 = vmatpush1.msra.mxu0 0.0
      %1609 = vmatprep.subr.mxu0 0.0
      %1610 = vmatpush1.msra.mxu0 0.0
      %1611 = vmatprep.subr.mxu0 0.0
      %1612 = vmatpush1.msra.mxu0 0.0
      %1613 = vmatprep.subr.mxu0 0.0
      %1614 = vmatpush1.msra.mxu0 0.0
      %1615 = vmatprep.subr.mxu0 0.0
      %1616 = vmatpush1.msra.mxu0 0.0
      %1617 = vmatprep.subr.mxu0 0.0
      %1618 = vmatpush1.msra.mxu0 0.0
      %1619 = vmatprep.subr.mxu0 0.0
      %1620 = vmatpush1.msra.mxu0 0.0
      %1621 = vmatprep.subr.mxu0 0.0
      %1622 = vmatpush1.msra.mxu0 0.0
      %1623 = vmatprep.subr.mxu0 0.0
      %1624 = vmatpush1.msra.mxu0 0.0
      %1625 = vmatprep.subr.mxu0 0.0
      %1626 = vmatpush1.msra.mxu0 %v480
      %1627 = vmatprep.subr.mxu0 0.0
      %1628 = vmatpush1.msra.mxu0 %v479
      %1629 = vmatprep.subr.mxu0 0.0
      %1630 = vmatpush1.msra.mxu0 %v478
      %1631 = vmatprep.subr.mxu0 0.0
      %1632 = vmatpush1.msra.mxu0 %v477
      %1633 = vmatprep.subr.mxu0 0.0
      %1634 = vmatpush2.msra.mxu0 0.0
      %1635 = vmatprep.subr.mxu0 0.0
      %1636 = vmatpush2.msra.mxu0 0.0
      %1637 = vmatprep.subr.mxu0 0.0
      %1638 = vmatpush2.msra.mxu0 0.0
      %1639 = vmatprep.subr.mxu0 0.0
      %1640 = vmatpush2.msra.mxu0 0.0
      %1641 = vmatprep.subr.mxu0 0.0
      %1642 = vmatpush2.msra.mxu0 0.0
      %1643 = vmatprep.subr.mxu0 0.0
      %1644 = vmatpush2.msra.mxu0 0.0
      %1645 = vmatprep.subr.mxu0 0.0
      %1646 = vmatpush2.msra.mxu0 0.0
      %1647 = vmatprep.subr.mxu0 0.0
      %1648 = vmatpush2.msra.mxu0 0.0
      %1649 = vmatprep.subr.mxu0 0.0
      %1650 = vmatpush2.msra.mxu0 0.0
      %1651 = vmatprep.subr.mxu0 0.0
      %1652 = vmatpush2.msra.mxu0 0.0
      %1653 = vmatprep.subr.mxu0 0.0
      %1654 = vmatpush2.msra.mxu0 0.0
      %1655 = vmatprep.subr.mxu0 0.0
      %1656 = vmatpush2.msra.mxu0 0.0
      %1657 = vmatprep.subr.mxu0 0.0
      %1658 = vmatpush2.msra.mxu0 0.0
      %1659 = vmatprep.subr.mxu0 0.0
      %1660 = vmatpush2.msra.mxu0 0.0
      %1661 = vmatprep.subr.mxu0 0.0
      %1662 = vmatpush2.msra.mxu0 0.0
      %1663 = vmatprep.subr.mxu0 0.0
      %1664 = vmatpush2.msra.mxu0 0.0
      %1665 = vmatprep.mubr.f32.mxu0 0.0
      %1666 = vmatmul.mubr.f32.gmra.mxu0 %v1499
      %v1667 = vpop.f32.mrf.mxu0
      %v1668 = vadd.f32 0.0, %v1667
      %v1669 = vpop.f32.mrf.mxu0
      %1670 = vdwg.mxu0
      %v1671 = vadd.f32 %v469, %v1668
      %v1672 = vxor.u32 %v1671, 2147483648
      %v1673 = vmul.f32 %v1672, 1.442695
      %v1674 = vpow.pop %v1673
      %v1675 = vadd.f32 %v1674, 1.0
      %v1676 = vrcp.pop %v1675
      %v1677 = vmul.f32 1.0, %v1676
      %v1678 = vtanh.pop %v1671
      %v1679 = vmul.f32 %v1677, %v1417
      %1681 = vrot.lane.b32.xlu0 %v1678, 64
      %v1682 = vpop.permute.xlu0 %1681
      %v1684 = vmul.f32 %v1677, %v1682
      %1686 = vrot.lane.b32.xlu0 %v1684, 32
      %v1687 = vpop.permute.xlu0 %1686
      %v1689 = vadd.f32 %v1679, %v1687
      %v1690 = vtanh.pop %v1689
      %1692 = vrot.lane.b32.xlu0 %v1690, 64
      %v1693 = vpop.permute.xlu0 %1692
      %v1695 = vmul.f32 %v1677, %v1693
      %v1696 = vsel %vm494, %v1598, 0
      %1698 = vmatprep.subr.mxu0 0.0
      %1699 = vmatpush1.msra.mxu0 0.0
      %1700 = vmatprep.subr.mxu0 0.0
      %1701 = vmatpush1.msra.mxu0 0.0
      %1702 = vmatprep.subr.mxu0 0.0
      %1703 = vmatpush1.msra.mxu0 0.0
      %1704 = vmatprep.subr.mxu0 0.0
      %1705 = vmatpush1.msra.mxu0 0.0
      %1706 = vmatprep.subr.mxu0 0.0
      %1707 = vmatpush1.msra.mxu0 0.0
      %1708 = vmatprep.subr.mxu0 0.0
      %1709 = vmatpush1.msra.mxu0 0.0
      %1710 = vmatprep.subr.mxu0 0.0
      %1711 = vmatpush1.msra.mxu0 0.0
      %1712 = vmatprep.subr.mxu0 0.0
      %1713 = vmatpush1.msra.mxu0 0.0
      %1714 = vmatprep.subr.mxu0 0.0
      %1715 = vmatpush1.msra.mxu0 0.0
      %1716 = vmatprep.subr.mxu0 0.0
      %1717 = vmatpush1.msra.mxu0 0.0
      %1718 = vmatprep.subr.mxu0 0.0
      %1719 = vmatpush1.msra.mxu0 0.0
      %1720 = vmatprep.subr.mxu0 0.0
      %1721 = vmatpush1.msra.mxu0 0.0
      %1722 = vmatprep.subr.mxu0 0.0
      %1723 = vmatpush1.msra.mxu0 %v488
      %1724 = vmatprep.subr.mxu0 0.0
      %1725 = vmatpush1.msra.mxu0 %v487
      %1726 = vmatprep.subr.mxu0 0.0
      %1727 = vmatpush1.msra.mxu0 %v486
      %1728 = vmatprep.subr.mxu0 0.0
      %1729 = vmatpush1.msra.mxu0 %v485
      %1730 = vmatprep.subr.mxu0 0.0
      %1731 = vmatpush2.msra.mxu0 0.0
      %1732 = vmatprep.subr.mxu0 0.0
      %1733 = vmatpush2.msra.mxu0 0.0
      %1734 = vmatprep.subr.mxu0 0.0
      %1735 = vmatpush2.msra.mxu0 0.0
      %1736 = vmatprep.subr.mxu0 0.0
      %1737 = vmatpush2.msra.mxu0 0.0
      %1738 = vmatprep.subr.mxu0 0.0
      %1739 = vmatpush2.msra.mxu0 0.0
      %1740 = vmatprep.subr.mxu0 0.0
      %1741 = vmatpush2.msra.mxu0 0.0
      %1742 = vmatprep.subr.mxu0 0.0
      %1743 = vmatpush2.msra.mxu0 0.0
      %1744 = vmatprep.subr.mxu0 0.0
      %1745 = vmatpush2.msra.mxu0 0.0
      %1746 = vmatprep.subr.mxu0 0.0
      %1747 = vmatpush2.msra.mxu0 0.0
      %1748 = vmatprep.subr.mxu0 0.0
      %1749 = vmatpush2.msra.mxu0 0.0
      %1750 = vmatprep.subr.mxu0 0.0
      %1751 = vmatpush2.msra.mxu0 0.0
      %1752 = vmatprep.subr.mxu0 0.0
      %1753 = vmatpush2.msra.mxu0 0.0
      %1754 = vmatprep.subr.mxu0 0.0
      %1755 = vmatpush2.msra.mxu0 0.0
      %1756 = vmatprep.subr.mxu0 0.0
      %1757 = vmatpush2.msra.mxu0 0.0
      %1758 = vmatprep.subr.mxu0 0.0
      %1759 = vmatpush2.msra.mxu0 0.0
      %1760 = vmatprep.subr.mxu0 0.0
      %1761 = vmatpush2.msra.mxu0 0.0
      %1762 = vmatprep.mubr.f32.mxu0 0.0
      %1763 = vmatmul.mubr.f32.gmra.mxu0 %v1696
      %v1764 = vpop.f32.mrf.mxu0
      %v1765 = vadd.f32 0.0, %v1764
      %v1766 = vpop.f32.mrf.mxu0
      %1767 = vdwg.mxu0
      %1769 = vrot.lane.b32.xlu0 %v1695, 32
      %v1770 = vpop.permute.xlu0 %1769
      %v1771 = vsel %vm494, %v1770, 0
      %1773 = vmatprep.subr.mxu0 0.0
      %1774 = vmatpush1.msra.mxu0 0.0
      %1775 = vmatprep.subr.mxu0 0.0
      %1776 = vmatpush1.msra.mxu0 0.0
      %1777 = vmatprep.subr.mxu0 0.0
      %1778 = vmatpush1.msra.mxu0 0.0
      %1779 = vmatprep.subr.mxu0 0.0
      %1780 = vmatpush1.msra.mxu0 0.0
      %1781 = vmatprep.subr.mxu0 0.0
      %1782 = vmatpush1.msra.mxu0 0.0
      %1783 = vmatprep.subr.mxu0 0.0
      %1784 = vmatpush1.msra.mxu0 0.0
      %1785 = vmatprep.subr.mxu0 0.0
      %1786 = vmatpush1.msra.mxu0 0.0
      %1787 = vmatprep.subr.mxu0 0.0
      %1788 = vmatpush1.msra.mxu0 0.0
      %1789 = vmatprep.subr.mxu0 0.0
      %1790 = vmatpush1.msra.mxu0 0.0
      %1791 = vmatprep.subr.mxu0 0.0
      %1792 = vmatpush1.msra.mxu0 0.0
      %1793 = vmatprep.subr.mxu0 0.0
      %1794 = vmatpush1.msra.mxu0 0.0
      %1795 = vmatprep.subr.mxu0 0.0
      %1796 = vmatpush1.msra.mxu0 0.0
      %1797 = vmatprep.subr.mxu0 0.0
      %1798 = vmatpush1.msra.mxu0 %v484
      %1799 = vmatprep.subr.mxu0 0.0
      %1800 = vmatpush1.msra.mxu0 %v483
      %1801 = vmatprep.subr.mxu0 0.0
      %1802 = vmatpush1.msra.mxu0 %v482
      %1803 = vmatprep.subr.mxu0 0.0
      %1804 = vmatpush1.msra.mxu0 %v481
      %1805 = vmatprep.subr.mxu0 0.0
      %1806 = vmatpush2.msra.mxu0 0.0
      %1807 = vmatprep.subr.mxu0 0.0
      %1808 = vmatpush2.msra.mxu0 0.0
      %1809 = vmatprep.subr.mxu0 0.0
      %1810 = vmatpush2.msra.mxu0 0.0
      %1811 = vmatprep.subr.mxu0 0.0
      %1812 = vmatpush2.msra.mxu0 0.0
      %1813 = vmatprep.subr.mxu0 0.0
      %1814 = vmatpush2.msra.mxu0 0.0
      %1815 = vmatprep.subr.mxu0 0.0
      %1816 = vmatpush2.msra.mxu0 0.0
      %1817 = vmatprep.subr.mxu0 0.0
      %1818 = vmatpush2.msra.mxu0 0.0
      %1819 = vmatprep.subr.mxu0 0.0
      %1820 = vmatpush2.msra.mxu0 0.0
      %1821 = vmatprep.subr.mxu0 0.0
      %1822 = vmatpush2.msra.mxu0 0.0
      %1823 = vmatprep.subr.mxu0 0.0
      %1824 = vmatpush2.msra.mxu0 0.0
      %1825 = vmatprep.subr.mxu0 0.0
      %1826 = vmatpush2.msra.mxu0 0.0
      %1827 = vmatprep.subr.mxu0 0.0
      %1828 = vmatpush2.msra.mxu0 0.0
      %1829 = vmatprep.subr.mxu0 0.0
      %1830 = vmatpush2.msra.mxu0 0.0
      %1831 = vmatprep.subr.mxu0 0.0
      %1832 = vmatpush2.msra.mxu0 0.0
      %1833 = vmatprep.subr.mxu0 0.0
      %1834 = vmatpush2.msra.mxu0 0.0
      %1835 = vmatprep.subr.mxu0 0.0
      %1836 = vmatpush2.msra.mxu0 0.0
      %1837 = vmatprep.mubr.f32.mxu0 0.0
      %1838 = vmatmul.mubr.f32.gmra.mxu0 %v1771
      %v1839 = vpop.f32.mrf.mxu0
      %v1840 = vadd.f32 %v1765, %v1839
      %v1841 = vpop.f32.mrf.mxu0
      %1842 = vdwg.mxu0
      %v1843 = vadd.f32 %v1840, %v749
      %v1844 = vxor.u32 %v1843, 2147483648
      %v1845 = vmul.f32 %v1844, 1.442695
      %v1846 = vpow.pop %v1845
      %v1847 = vadd.f32 %v1846, 1.0
      %v1848 = vrcp.pop %v1847
      %v1849 = vmul.f32 1.0, %v1848
      %v1850 = vtanh.pop %v1843
      %v1851 = vmul.f32 %v1849, %v1589
      %1853 = vrot.lane.b32.xlu0 %v1850, 64
      %v1854 = vpop.permute.xlu0 %1853
      %v1856 = vmul.f32 %v1849, %v1854
      %1858 = vrot.lane.b32.xlu0 %v1856, 32
      %v1859 = vpop.permute.xlu0 %1858
      %v1861 = vadd.f32 %v1851, %v1859
      %v1862 = vtanh.pop %v1861
      %1864 = vrot.lane.b32.xlu0 %v1862, 64
      %v1865 = vpop.permute.xlu0 %1864
      %v1867 = vmul.f32 %v1849, %v1865
      %1869 = vrot.lane.b32.xlu0 %v1867, 32
      %v1870 = vpop.permute.xlu0 %1869
      %1872 = vst.msk [vmem:[#allocation6 + $0x20] sm:$0xff] %vm494, %v1870
      %1873 = vmatprep.subr.mxu0 0.0
      %1874 = vmatpush1.msra.mxu0 0.0
      %1875 = vmatprep.subr.mxu0 0.0
      %1876 = vmatpush1.msra.mxu0 0.0
      %1877 = vmatprep.subr.mxu0 0.0
      %1878 = vmatpush1.msra.mxu0 0.0
      %1879 = vmatprep.subr.mxu0 0.0
      %1880 = vmatpush1.msra.mxu0 0.0
      %1881 = vmatprep.subr.mxu0 0.0
      %1882 = vmatpush1.msra.mxu0 0.0
      %1883 = vmatprep.subr.mxu0 0.0
      %1884 = vmatpush1.msra.mxu0 0.0
      %1885 = vmatprep.subr.mxu0 0.0
      %1886 = vmatpush1.msra.mxu0 0.0
      %1887 = vmatprep.subr.mxu0 0.0
      %1888 = vmatpush1.msra.mxu0 0.0
      %1889 = vmatprep.subr.mxu0 0.0
      %1890 = vmatpush1.msra.mxu0 0.0
      %1891 = vmatprep.subr.mxu0 0.0
      %1892 = vmatpush1.msra.mxu0 0.0
      %1893 = vmatprep.subr.mxu0 0.0
      %1894 = vmatpush1.msra.mxu0 0.0
      %1895 = vmatprep.subr.mxu0 0.0
      %1896 = vmatpush1.msra.mxu0 0.0
      %1897 = vmatprep.subr.mxu0 0.0
      %1898 = vmatpush1.msra.mxu0 %v480
      %1899 = vmatprep.subr.mxu0 0.0
      %1900 = vmatpush1.msra.mxu0 %v479
      %1901 = vmatprep.subr.mxu0 0.0
      %1902 = vmatpush1.msra.mxu0 %v478
      %1903 = vmatprep.subr.mxu0 0.0
      %1904 = vmatpush1.msra.mxu0 %v477
      %1905 = vmatprep.subr.mxu0 0.0
      %1906 = vmatpush2.msra.mxu0 0.0
      %1907 = vmatprep.subr.mxu0 0.0
      %1908 = vmatpush2.msra.mxu0 0.0
      %1909 = vmatprep.subr.mxu0 0.0
      %1910 = vmatpush2.msra.mxu0 0.0
      %1911 = vmatprep.subr.mxu0 0.0
      %1912 = vmatpush2.msra.mxu0 0.0
      %1913 = vmatprep.subr.mxu0 0.0
      %1914 = vmatpush2.msra.mxu0 0.0
      %1915 = vmatprep.subr.mxu0 0.0
      %1916 = vmatpush2.msra.mxu0 0.0
      %1917 = vmatprep.subr.mxu0 0.0
      %1918 = vmatpush2.msra.mxu0 0.0
      %1919 = vmatprep.subr.mxu0 0.0
      %1920 = vmatpush2.msra.mxu0 0.0
      %1921 = vmatprep.subr.mxu0 0.0
      %1922 = vmatpush2.msra.mxu0 0.0
      %1923 = vmatprep.subr.mxu0 0.0
      %1924 = vmatpush2.msra.mxu0 0.0
      %1925 = vmatprep.subr.mxu0 0.0
      %1926 = vmatpush2.msra.mxu0 0.0
      %1927 = vmatprep.subr.mxu0 0.0
      %1928 = vmatpush2.msra.mxu0 0.0
      %1929 = vmatprep.subr.mxu0 0.0
      %1930 = vmatpush2.msra.mxu0 0.0
      %1931 = vmatprep.subr.mxu0 0.0
      %1932 = vmatpush2.msra.mxu0 0.0
      %1933 = vmatprep.subr.mxu0 0.0
      %1934 = vmatpush2.msra.mxu0 0.0
      %1935 = vmatprep.subr.mxu0 0.0
      %1936 = vmatpush2.msra.mxu0 0.0
      %1937 = vmatprep.mubr.f32.mxu0 0.0
      %1938 = vmatmul.mubr.f32.gmra.mxu0 %v1771
      %v1939 = vpop.f32.mrf.mxu0
      %v1940 = vadd.f32 0.0, %v1939
      %v1941 = vpop.f32.mrf.mxu0
      %1942 = vdwg.mxu0
      %v1943 = vadd.f32 %v474, %v1940
      %v1944 = vxor.u32 %v1943, 2147483648
      %v1945 = vmul.f32 %v1944, 1.442695
      %v1946 = vpow.pop %v1945
      %v1947 = vadd.f32 %v1946, 1.0
      %v1948 = vrcp.pop %v1947
      %v1949 = vmul.f32 1.0, %v1948
      %v1950 = vtanh.pop %v1943
      %v1951 = vmul.f32 %v1949, %v1689
      %1953 = vrot.lane.b32.xlu0 %v1950, 64
      %v1954 = vpop.permute.xlu0 %1953
      %v1956 = vmul.f32 %v1949, %v1954
      %1958 = vrot.lane.b32.xlu0 %v1956, 32
      %v1959 = vpop.permute.xlu0 %1958
      %v1961 = vadd.f32 %v1951, %v1959
      %v1962 = vtanh.pop %v1961
      %1964 = vrot.lane.b32.xlu0 %v1962, 64
      %v1965 = vpop.permute.xlu0 %1964
      %v1967 = vmul.f32 %v1949, %v1965
      %v1968 = vsel %vm494, %v1870, 0
      %1970 = vmatprep.subr.mxu0 0.0
      %1971 = vmatpush1.msra.mxu0 0.0
      %1972 = vmatprep.subr.mxu0 0.0
      %1973 = vmatpush1.msra.mxu0 0.0
      %1974 = vmatprep.subr.mxu0 0.0
      %1975 = vmatpush1.msra.mxu0 0.0
      %1976 = vmatprep.subr.mxu0 0.0
      %1977 = vmatpush1.msra.mxu0 0.0
      %1978 = vmatprep.subr.mxu0 0.0
      %1979 = vmatpush1.msra.mxu0 0.0
      %1980 = vmatprep.subr.mxu0 0.0
      %1981 = vmatpush1.msra.mxu0 0.0
      %1982 = vmatprep.subr.mxu0 0.0
      %1983 = vmatpush1.msra.mxu0 0.0
      %1984 = vmatprep.subr.mxu0 0.0
      %1985 = vmatpush1.msra.mxu0 0.0
      %1986 = vmatprep.subr.mxu0 0.0
      %1987 = vmatpush1.msra.mxu0 0.0
      %1988 = vmatprep.subr.mxu0 0.0
      %1989 = vmatpush1.msra.mxu0 0.0
      %1990 = vmatprep.subr.mxu0 0.0
      %1991 = vmatpush1.msra.mxu0 0.0
      %1992 = vmatprep.subr.mxu0 0.0
      %1993 = vmatpush1.msra.mxu0 0.0
      %1994 = vmatprep.subr.mxu0 0.0
      %1995 = vmatpush1.msra.mxu0 %v488
      %1996 = vmatprep.subr.mxu0 0.0
      %1997 = vmatpush1.msra.mxu0 %v487
      %1998 = vmatprep.subr.mxu0 0.0
      %1999 = vmatpush1.msra.mxu0 %v486
      %2000 = vmatprep.subr.mxu0 0.0
      %2001 = vmatpush1.msra.mxu0 %v485
      %2002 = vmatprep.subr.mxu0 0.0
      %2003 = vmatpush2.msra.mxu0 0.0
      %2004 = vmatprep.subr.mxu0 0.0
      %2005 = vmatpush2.msra.mxu0 0.0
      %2006 = vmatprep.subr.mxu0 0.0
      %2007 = vmatpush2.msra.mxu0 0.0
      %2008 = vmatprep.subr.mxu0 0.0
      %2009 = vmatpush2.msra.mxu0 0.0
      %2010 = vmatprep.subr.mxu0 0.0
      %2011 = vmatpush2.msra.mxu0 0.0
      %2012 = vmatprep.subr.mxu0 0.0
      %2013 = vmatpush2.msra.mxu0 0.0
      %2014 = vmatprep.subr.mxu0 0.0
      %2015 = vmatpush2.msra.mxu0 0.0
      %2016 = vmatprep.subr.mxu0 0.0
      %2017 = vmatpush2.msra.mxu0 0.0
      %2018 = vmatprep.subr.mxu0 0.0
      %2019 = vmatpush2.msra.mxu0 0.0
      %2020 = vmatprep.subr.mxu0 0.0
      %2021 = vmatpush2.msra.mxu0 0.0
      %2022 = vmatprep.subr.mxu0 0.0
      %2023 = vmatpush2.msra.mxu0 0.0
      %2024 = vmatprep.subr.mxu0 0.0
      %2025 = vmatpush2.msra.mxu0 0.0
      %2026 = vmatprep.subr.mxu0 0.0
      %2027 = vmatpush2.msra.mxu0 0.0
      %2028 = vmatprep.subr.mxu0 0.0
      %2029 = vmatpush2.msra.mxu0 0.0
      %2030 = vmatprep.subr.mxu0 0.0
      %2031 = vmatpush2.msra.mxu0 0.0
      %2032 = vmatprep.subr.mxu0 0.0
      %2033 = vmatpush2.msra.mxu0 0.0
      %2034 = vmatprep.mubr.f32.mxu0 0.0
      %2035 = vmatmul.mubr.f32.gmra.mxu0 %v1968
      %v2036 = vpop.f32.mrf.mxu0
      %v2037 = vadd.f32 0.0, %v2036
      %v2038 = vpop.f32.mrf.mxu0
      %2039 = vdwg.mxu0
      %2041 = vrot.lane.b32.xlu0 %v1967, 32
      %v2042 = vpop.permute.xlu0 %2041
      %v2043 = vsel %vm494, %v2042, 0
      %2045 = vmatprep.subr.mxu0 0.0
      %2046 = vmatpush1.msra.mxu0 0.0
      %2047 = vmatprep.subr.mxu0 0.0
      %2048 = vmatpush1.msra.mxu0 0.0
      %2049 = vmatprep.subr.mxu0 0.0
      %2050 = vmatpush1.msra.mxu0 0.0
      %2051 = vmatprep.subr.mxu0 0.0
      %2052 = vmatpush1.msra.mxu0 0.0
      %2053 = vmatprep.subr.mxu0 0.0
      %2054 = vmatpush1.msra.mxu0 0.0
      %2055 = vmatprep.subr.mxu0 0.0
      %2056 = vmatpush1.msra.mxu0 0.0
      %2057 = vmatprep.subr.mxu0 0.0
      %2058 = vmatpush1.msra.mxu0 0.0
      %2059 = vmatprep.subr.mxu0 0.0
      %2060 = vmatpush1.msra.mxu0 0.0
      %2061 = vmatprep.subr.mxu0 0.0
      %2062 = vmatpush1.msra.mxu0 0.0
      %2063 = vmatprep.subr.mxu0 0.0
      %2064 = vmatpush1.msra.mxu0 0.0
      %2065 = vmatprep.subr.mxu0 0.0
      %2066 = vmatpush1.msra.mxu0 0.0
      %2067 = vmatprep.subr.mxu0 0.0
      %2068 = vmatpush1.msra.mxu0 0.0
      %2069 = vmatprep.subr.mxu0 0.0
      %2070 = vmatpush1.msra.mxu0 %v484
      %2071 = vmatprep.subr.mxu0 0.0
      %2072 = vmatpush1.msra.mxu0 %v483
      %2073 = vmatprep.subr.mxu0 0.0
      %2074 = vmatpush1.msra.mxu0 %v482
      %2075 = vmatprep.subr.mxu0 0.0
      %2076 = vmatpush1.msra.mxu0 %v481
      %2077 = vmatprep.subr.mxu0 0.0
      %2078 = vmatpush2.msra.mxu0 0.0
      %2079 = vmatprep.subr.mxu0 0.0
      %2080 = vmatpush2.msra.mxu0 0.0
      %2081 = vmatprep.subr.mxu0 0.0
      %2082 = vmatpush2.msra.mxu0 0.0
      %2083 = vmatprep.subr.mxu0 0.0
      %2084 = vmatpush2.msra.mxu0 0.0
      %2085 = vmatprep.subr.mxu0 0.0
      %2086 = vmatpush2.msra.mxu0 0.0
      %2087 = vmatprep.subr.mxu0 0.0
      %2088 = vmatpush2.msra.mxu0 0.0
      %2089 = vmatprep.subr.mxu0 0.0
      %2090 = vmatpush2.msra.mxu0 0.0
      %2091 = vmatprep.subr.mxu0 0.0
      %2092 = vmatpush2.msra.mxu0 0.0
      %2093 = vmatprep.subr.mxu0 0.0
      %2094 = vmatpush2.msra.mxu0 0.0
      %2095 = vmatprep.subr.mxu0 0.0
      %2096 = vmatpush2.msra.mxu0 0.0
      %2097 = vmatprep.subr.mxu0 0.0
      %2098 = vmatpush2.msra.mxu0 0.0
      %2099 = vmatprep.subr.mxu0 0.0
      %2100 = vmatpush2.msra.mxu0 0.0
      %2101 = vmatprep.subr.mxu0 0.0
      %2102 = vmatpush2.msra.mxu0 0.0
      %2103 = vmatprep.subr.mxu0 0.0
      %2104 = vmatpush2.msra.mxu0 0.0
      %2105 = vmatprep.subr.mxu0 0.0
      %2106 = vmatpush2.msra.mxu0 0.0
      %2107 = vmatprep.subr.mxu0 0.0
      %2108 = vmatpush2.msra.mxu0 0.0
      %2109 = vmatprep.mubr.f32.mxu0 0.0
      %2110 = vmatmul.mubr.f32.gmra.mxu0 %v2043
      %v2111 = vpop.f32.mrf.mxu0
      %v2112 = vadd.f32 %v2037, %v2111
      %v2113 = vpop.f32.mrf.mxu0
      %2114 = vdwg.mxu0
      %v2115 = vadd.f32 %v2112, %v749
      %v2116 = vxor.u32 %v2115, 2147483648
      %v2117 = vmul.f32 %v2116, 1.442695
      %v2118 = vpow.pop %v2117
      %v2119 = vadd.f32 %v2118, 1.0
      %v2120 = vrcp.pop %v2119
      %v2121 = vmul.f32 1.0, %v2120
      %v2122 = vtanh.pop %v2115
      %v2123 = vmul.f32 %v2121, %v1861
      %2125 = vrot.lane.b32.xlu0 %v2122, 64
      %v2126 = vpop.permute.xlu0 %2125
      %v2128 = vmul.f32 %v2121, %v2126
      %2130 = vrot.lane.b32.xlu0 %v2128, 32
      %v2131 = vpop.permute.xlu0 %2130
      %v2133 = vadd.f32 %v2123, %v2131
      %v2134 = vtanh.pop %v2133
      %2136 = vrot.lane.b32.xlu0 %v2134, 64
      %v2137 = vpop.permute.xlu0 %2136
      %v2139 = vmul.f32 %v2121, %v2137
      %2141 = vrot.lane.b32.xlu0 %v2139, 32
      %v2142 = vpop.permute.xlu0 %2141
      %2144 = vst.msk [vmem:[#allocation6 + $0x28] sm:$0xff] %vm494, %v2142
      %2146 = vst.msk [vmem:[#allocation2] sm:$0xff] %vm494, %v2042
      %2148 = vrot.lane.b32.xlu0 %v1961, 96
      %v2149 = vpop.permute.xlu0 %2148
      %2151 = vst.msk [vmem:[#allocation3] sm:$0xff] %vm494, %v2149
      %2152 = vst.msk [vmem:[#allocation4] sm:$0xff] %vm494, %v2142
      %2154 = vrot.lane.b32.xlu0 %v2133, 96
      %v2155 = vpop.permute.xlu0 %2154
      %2157 = vst.msk [vmem:[#allocation5] sm:$0xff] %vm494, %v2155
      %v2158 = vld [vmem:[#allocation6] sm:$0xff]
      %v2159 = vld [vmem:[#allocation6 + $0x8] sm:$0xff]
      %v2160 = vld [vmem:[#allocation6 + $0x10] sm:$0xff]
      %v2161 = vld [vmem:[#allocation6 + $0x18] sm:$0xff]
      %v2162 = vld [vmem:[#allocation6 + $0x20] sm:$0xff]
      %v2163 = vld [vmem:[#allocation6 + $0x28] sm:$0xff]
      %v2164 = vld [vmem:[%s7] sm:$0xff]
      %v2165 = vld [vmem:[%s7 + $0x8] sm:$0xff]
      %v2166 = vld [vmem:[%s7 + $0x10] sm:$0xff]
      %v2167 = vld [vmem:[%s7 + $0x18] sm:$0xff]
      %v2168 = vld [vmem:[%s8] sm:$0x1]
      %v2170 = vlaneseq
      %v2171 = vshrl.u32 %v2170, 7
      %v2172 = vsub.s32 0, %v2171
      %v2173 = vrot.slane %v2168, %v2172
      %v2176 = vsel %vm494, %v2158, 0
      %v2179 = vsel %vm494, %v2159, 0
      %v2182 = vsel %vm494, %v2160, 0
      %v2185 = vsel %vm494, %v2161, 0
      %v2188 = vsel %vm494, %v2162, 0
      %v2191 = vsel %vm494, %v2163, 0
      %2193 = vmatprep.subr.mxu0 0.0
      %2194 = vmatpush1.msra.mxu0 0.0
      %2195 = vmatprep.subr.mxu0 0.0
      %2196 = vmatpush1.msra.mxu0 0.0
      %2197 = vmatprep.subr.mxu0 0.0
      %2198 = vmatpush1.msra.mxu0 0.0
      %2199 = vmatprep.subr.mxu0 0.0
      %2200 = vmatpush1.msra.mxu0 0.0
      %2201 = vmatprep.subr.mxu0 0.0
      %2202 = vmatpush1.msra.mxu0 0.0
      %2203 = vmatprep.subr.mxu0 0.0
      %2204 = vmatpush1.msra.mxu0 0.0
      %2205 = vmatprep.subr.mxu0 0.0
      %2206 = vmatpush1.msra.mxu0 0.0
      %2207 = vmatprep.subr.mxu0 0.0
      %2208 = vmatpush1.msra.mxu0 0.0
      %2209 = vmatprep.subr.mxu0 0.0
      %2210 = vmatpush1.msra.mxu0 0.0
      %2211 = vmatprep.subr.mxu0 0.0
      %2212 = vmatpush1.msra.mxu0 0.0
      %2213 = vmatprep.subr.mxu0 0.0
      %2214 = vmatpush1.msra.mxu0 0.0
      %2215 = vmatprep.subr.mxu0 0.0
      %2216 = vmatpush1.msra.mxu0 0.0
      %2217 = vmatprep.subr.mxu0 0.0
      %2218 = vmatpush1.msra.mxu0 %v2167
      %2219 = vmatprep.subr.mxu0 0.0
      %2220 = vmatpush1.msra.mxu0 %v2166
      %2221 = vmatprep.subr.mxu0 0.0
      %2222 = vmatpush1.msra.mxu0 %v2165
      %2223 = vmatprep.subr.mxu0 0.0
      %2224 = vmatpush1.msra.mxu0 %v2164
      %2225 = vmatprep.subr.mxu0 0.0
      %2226 = vmatpush2.msra.mxu0 0.0
      %2227 = vmatprep.subr.mxu0 0.0
      %2228 = vmatpush2.msra.mxu0 0.0
      %2229 = vmatprep.subr.mxu0 0.0
      %2230 = vmatpush2.msra.mxu0 0.0
      %2231 = vmatprep.subr.mxu0 0.0
      %2232 = vmatpush2.msra.mxu0 0.0
      %2233 = vmatprep.subr.mxu0 0.0
      %2234 = vmatpush2.msra.mxu0 0.0
      %2235 = vmatprep.subr.mxu0 0.0
      %2236 = vmatpush2.msra.mxu0 0.0
      %2237 = vmatprep.subr.mxu0 0.0
      %2238 = vmatpush2.msra.mxu0 0.0
      %2239 = vmatprep.subr.mxu0 0.0
      %2240 = vmatpush2.msra.mxu0 0.0
      %2241 = vmatprep.subr.mxu0 0.0
      %2242 = vmatpush2.msra.mxu0 0.0
      %2243 = vmatprep.subr.mxu0 0.0
      %2244 = vmatpush2.msra.mxu0 0.0
      %2245 = vmatprep.subr.mxu0 0.0
      %2246 = vmatpush2.msra.mxu0 0.0
      %2247 = vmatprep.subr.mxu0 0.0
      %2248 = vmatpush2.msra.mxu0 0.0
      %2249 = vmatprep.subr.mxu0 0.0
      %2250 = vmatpush2.msra.mxu0 0.0
      %2251 = vmatprep.subr.mxu0 0.0
      %2252 = vmatpush2.msra.mxu0 0.0
      %2253 = vmatprep.subr.mxu0 0.0
      %2254 = vmatpush2.msra.mxu0 0.0
      %2255 = vmatprep.subr.mxu0 0.0
      %2256 = vmatpush2.msra.mxu0 0.0
      %2257 = vmatprep.mubr.f32.mxu0 0.0
      %2258 = vmatmul.mubr.f32.gmra.mxu0 %v2176
      %v2259 = vpop.f32.mrf.mxu0
      %v2260 = vadd.f32 %v2173, %v2259
      %v2261 = vpop.f32.mrf.mxu0
      %2262 = vmatprep.mubr.f32.mxu0 0.0
      %2263 = vmatmul.mubr.f32.gmra.mxu0 %v2179
      %v2264 = vpop.f32.mrf.mxu0
      %v2265 = vadd.f32 %v2173, %v2264
      %v2266 = vpop.f32.mrf.mxu0
      %2267 = vmatprep.mubr.f32.mxu0 0.0
      %2268 = vmatmul.mubr.f32.gmra.mxu0 %v2182
      %v2269 = vpop.f32.mrf.mxu0
      %v2270 = vadd.f32 %v2173, %v2269
      %v2271 = vpop.f32.mrf.mxu0
      %2272 = vmatprep.mubr.f32.mxu0 0.0
      %2273 = vmatmul.mubr.f32.gmra.mxu0 %v2185
      %v2274 = vpop.f32.mrf.mxu0
      %v2275 = vadd.f32 %v2173, %v2274
      %v2276 = vpop.f32.mrf.mxu0
      %2277 = vmatprep.mubr.f32.mxu0 0.0
      %2278 = vmatmul.mubr.f32.gmra.mxu0 %v2188
      %v2279 = vpop.f32.mrf.mxu0
      %v2280 = vadd.f32 %v2173, %v2279
      %v2281 = vpop.f32.mrf.mxu0
      %2282 = vmatprep.mubr.f32.mxu0 0.0
      %2283 = vmatmul.mubr.f32.gmra.mxu0 %v2191
      %v2284 = vpop.f32.mrf.mxu0
      %v2285 = vadd.f32 %v2173, %v2284
      %v2286 = vpop.f32.mrf.mxu0
      %2287 = vdwg.mxu0
      %2288 = vst [vmem:[%s334] sm:$0xff] %v2260
      %2289 = vst [vmem:[%s334 + $0x8] sm:$0xff] %v2265
      %2290 = vst [vmem:[%s334 + $0x10] sm:$0xff] %v2270
      %2291 = vst [vmem:[%s334 + $0x18] sm:$0xff] %v2275
      %2292 = vst [vmem:[%s334 + $0x20] sm:$0xff] %v2280
      %2293 = vst [vmem:[%s334 + $0x28] sm:$0xff] %v2285
      %s2294 = smul.u32 6, %s20
      %p2295 = scmp.lt.s32.totalorder %s2294, 11
      %s2296 = scalar_select %p2295, %s2294, 11
      %s2297 = smul.addr %s2296, 8
      %s2298 = scalar_lea.vmem %s9, %s2297
      // Predicated region
      $region61: #{net_shampoo_forward.1} parent=55 // pred_check
        %p2299 = pneg %p232
      $region62: #{net_shampoo_forward.1} parent=55 // pred_check_branch
        %2301 = sbr.rel (%p2299) target = $region64
      $region63: #{net_shampoo_forward.1} parent=55 // pred_region
        %s2302 = smul.u32 6, %s20
      $region64: #{net_shampoo_forward.1} parent=55 // pred_fallthru
        _
    $region56: #{net_shampoo_forward.1} parent=5 // pred_fallthru
      _
    %p2303 = scmp.le.s32.totalorder 2, %s15
    // Predicated region
    $region65: #{net_shampoo_forward.1} parent=5 // pred_check
      %p2304 = pneg %p2303
    $region66: #{net_shampoo_forward.1} parent=5 // pred_check_branch
      %2306 = sbr.rel (%p2304) target = $region68
    $region67: #{net_shampoo_forward.1} parent=5 // pred_region
      %s2307 = ssub.s32 %s15, 2
      // Predicated region
      $region69: #{net_shampoo_forward.1} parent=67 // pred_check
        %p2308 = pneg %p238
      $region70: #{net_shampoo_forward.1} parent=67 // pred_check_branch
        %2310 = sbr.rel (%p2308) target = $region72
      $region71: #{net_shampoo_forward.1} parent=67 // pred_region
        %s2311 = smul.u32 6, %s21
        %p2312 = scmp.lt.s32.totalorder %s2311, 11
        %s2313 = scalar_select %p2312, %s2311, 11
        %s2314 = smul.addr %s2313, 8
        %s2315 = scalar_lea.vmem %s9, %s2314
      $region72: #{net_shampoo_forward.1} parent=67 // pred_fallthru
        _
    $region68: #{net_shampoo_forward.1} parent=5 // pred_fallthru
      _
  $region6: #{net_shampoo_forward.1} parent=0 // loop_footer
    %s19 = sadd.s32 1, %s15
  $region7: #{net_shampoo_forward.1} parent=0 // loop_footer_branch
    %14 = sbr.rel target = $region3
  $region8: #{net_shampoo_forward.1} parent=0 // loop_exit
    _

</llo_original>
